<compile_context>
chip_gen: v6e
topology: v6e:2x2x1
jax: 0.10.0
libtpu: 0.0.40
codegen_flags: <defaults>
</compile_context>

<pallas_src>
import functools

import jax
import jax.numpy as jnp
from jax import lax
from jax.experimental import pallas as pl
from jax.experimental.pallas import tpu as pltpu


# ---------------------------------------------------------------------------
# K / V projection kernel (pipelined over (B, seq tiles))
# ---------------------------------------------------------------------------
def _kv_proj_kernel(x_ref, wk_ref, bk_ref, wv_ref, bv_ref, k_ref, v_ref,
                    *, compute_dtype):
    x = x_ref[0].astype(compute_dtype)                              # (T, H)
    k = jnp.dot(x, wk_ref[...].astype(compute_dtype),
                preferred_element_type=jnp.float32) + bk_ref[...]
    v = jnp.dot(x, wv_ref[...].astype(compute_dtype),
                preferred_element_type=jnp.float32) + bv_ref[...]
    k_ref[0] = k.astype(k_ref.dtype)
    v_ref[0] = v.astype(v_ref.dtype)


# ---------------------------------------------------------------------------
# Transformer block kernel (attention + LN1 + FFN + LN2) per (batch, q-tile)
# ---------------------------------------------------------------------------
def _viral_block_kernel(
    xq_ref, k_ref, v_ref,
    wq_ref, bq_ref, wo_ref, bo_ref,
    w1_ref, b1_ref, w2_ref, b2_ref,
    g1_ref, be1_ref, g2_ref, be2_ref,
    out_ref, attnw_ref,
    attn_slab,
    *, num_heads, head_dim, compute_dtype, eps=1e-5,
):
    x_q = xq_ref[0]                                                 # (TQ, H)

    # Q projection for this row tile; fold 1/sqrt(head_dim) into q
    # (TQ*H mults once instead of TQ*S per head).
    q = jnp.dot(x_q.astype(compute_dtype), wq_ref[...].astype(compute_dtype),
                preferred_element_type=jnp.float32) + bq_ref[...]
    q = (q * (1.0 / (head_dim ** 0.5))).astype(compute_dtype)

    k = k_ref[0].astype(compute_dtype)                              # (S, H)
    v = v_ref[0].astype(compute_dtype)                              # (S, H)

    # TODO(synk): attention mask (masked_fill with -1e9) omitted -- the layer
    # is exercised with mask=None.
    for h in range(num_heads):                                      # static loop, nh small
        lo = h * head_dim
        hi = lo + head_dim
        qh = q[:, lo:hi]                                            # (TQ, hd)
        kh = k[:, lo:hi]                                            # (S, hd)
        vh = v[:, lo:hi]                                            # (S, hd)

        # Contract head_dim of both operands directly (no kh.T materialization).
        s = lax.dot_general(qh, kh, (((1,), (1,)), ((), ())),
                            preferred_element_type=jnp.float32)     # (TQ, S)
        s = s - jnp.max(s, axis=-1, keepdims=True)
        p = jnp.exp(s)
        # approx=True: reciprocal runs in the otherwise-idle EUP slot.
        p = p * pl.reciprocal(jnp.sum(p, axis=-1, keepdims=True), approx=True)
        attnw_ref[0, h] = p.astype(attnw_ref.dtype)

        head_out = jnp.dot(p.astype(compute_dtype), vh,
                           preferred_element_type=jnp.float32)      # (TQ, hd)
        # Stage head output into a (TQ, H) VMEM slab; the output projection is
        # done ONCE after the loop with a full-H contraction (better MXU fill,
        # no per-head f32 accumulator held live across the unrolled loop).
        attn_slab[:, lo:hi] = head_out.astype(attn_slab.dtype)

    attn_out = jnp.dot(attn_slab[...], wo_ref[...].astype(compute_dtype),
                       preferred_element_type=jnp.float32) + bo_ref[...]

    # residual + LayerNorm1 (f32 math)
    h1 = x_q.astype(jnp.float32) + attn_out
    mu1 = jnp.mean(h1, axis=-1, keepdims=True)
    var1 = jnp.mean((h1 - mu1) ** 2, axis=-1, keepdims=True)
    h1 = (h1 - mu1) * lax.rsqrt(var1 + eps) * g1_ref[...] + be1_ref[...]

    # feed-forward: Linear(H, 4H) -> ReLU -> Linear(4H, H)   (dropouts identity)
    f = jnp.dot(h1.astype(compute_dtype), w1_ref[...].astype(compute_dtype),
                preferred_element_type=jnp.float32) + b1_ref[...]
    f = jnp.maximum(f, 0.0)
    f = jnp.dot(f.astype(compute_dtype), w2_ref[...].astype(compute_dtype),
                preferred_element_type=jnp.float32) + b2_ref[...]

    # residual + LayerNorm2
    h2 = h1 + f
    mu2 = jnp.mean(h2, axis=-1, keepdims=True)
    var2 = jnp.mean((h2 - mu2) ** 2, axis=-1, keepdims=True)
    out = (h2 - mu2) * lax.rsqrt(var2 + eps) * g2_ref[...] + be2_ref[...]

    out_ref[0] = out.astype(out_ref.dtype)


# ---------------------------------------------------------------------------
# VMEM budgeting / tiling helpers
# ---------------------------------------------------------------------------
def _chip_vmem_capacity():
    try:
        info = pltpu.get_tpu_info()
        cap = getattr(info, "vmem_capacity_bytes", None)
        if cap:
            return int(cap)
    except Exception:
        pass
    return 64 << 20   # conservative default (v7x per-core VMEM)


def _estimate_main_vmem(S, H, nh, tq, x_item, attnw_item, comp_item,
                        weight_bytes, weight_bufs):
    est = weight_bufs * weight_bytes
    est += 2 * tq * H * x_item                 # x q-tile (double-buffered)
    est += 2 * 2 * S * H * x_item              # K and V per-batch resident blocks
    est += 2 * tq * H * x_item                 # out block
    est += 2 * nh * tq * S * attnw_item        # attn-weights out block
    est += tq * H * comp_item                  # head-output slab scratch
    # f32 intermediates (scores / p / h1 / h2 / FFN hidden) headroom
    est += 4 * (3 * tq * S + 8 * tq * H + 4 * tq * H)
    return est


def _pick_q_tile(S, budget, est_fn):
    cands = [t for t in (1024, 512, 256, 128, 64, 32, 16, 8) if t <= S and S % t == 0]
    if not cands:
        return S
    for t in cands:                            # descending: biggest tile that fits
        if est_fn(t) <= budget:
            return t
    return cands[-1]


# ---------------------------------------------------------------------------
# Wrapper
# ---------------------------------------------------------------------------
def viral_detector_layer(x, params, *, num_heads, q_tile=None,
                         compute_dtype=None, attn_weights_dtype=None,
                         single_buffer_weights=True):
    """x: [B, S, H]; params: dict of weights. Returns (out [B,S,H], attn_w [B,nh,S,S]).

    compute_dtype:      MXU operand dtype (default x.dtype; pass jnp.bfloat16
                        for full-rate MXU on v6e/v7x, accumulation stays f32).
    attn_weights_dtype: dtype of the returned attention weights (default
                        x.dtype; pass jnp.bfloat16 to halve the HBM-write-bound
                        nh*S^2 writeback).
    """
    B, S, H = x.shape
    head_dim = H // num_heads
    if compute_dtype is None:
        compute_dtype = x.dtype
    if attn_weights_dtype is None:
        attn_weights_dtype = x.dtype

    main_weights = [params["wq"], params["bq"], params["wo"], params["bo"],
                    params["w1"], params["b1"], params["w2"], params["b2"],
                    params["g1"], params["be1"], params["g2"], params["be2"]]
    kv_weights = [params["wk"], params["bk"], params["wv"], params["bv"]]

    def nbytes(a):
        return a.size * a.dtype.itemsize

    weight_bufs = 1 if single_buffer_weights else 2
    weight_bytes = sum(nbytes(p) for p in main_weights)

    cap = _chip_vmem_capacity()
    xi = x.dtype.itemsize
    ai = jnp.dtype(attn_weights_dtype).itemsize
    ci = jnp.dtype(compute_dtype).itemsize

    def est(tq):
        return _estimate_main_vmem(S, H, num_heads, tq, xi, ai, ci,
                                   weight_bytes, weight_bufs)

    if q_tile is None:
        q_tile = _pick_q_tile(S, int(0.8 * cap), est)
    assert S % q_tile == 0
    nq = S // q_tile

    # Per-chip scoped-VMEM limit: generous but never above ~90% of capacity
    # (no artificial 64 MiB cap on v5e/v6e which have 128 MiB physical).
    vmem_limit = int(min(max(int(1.5 * est(q_tile)), 32 << 20), int(0.9 * cap)))

    # Grid-invariant weights: single-buffer them (constant index_map means a
    # second buffer is pure VMEM waste).  Fall back if pipeline_mode / Buffered
    # is unsupported by the installed JAX.
    def const_spec(p):
        n = p.ndim
        idx = lambda b, s, _n=n: (0,) * _n
        if single_buffer_weights:
            try:
                return pl.BlockSpec(p.shape, idx, pipeline_mode=pl.Buffered(1))
            except TypeError:
                pass
        return pl.BlockSpec(p.shape, idx)

    compiler = pltpu.CompilerParams(
        dimension_semantics=("parallel", "parallel"),
        vmem_limit_bytes=vmem_limit,
    )

    # --- K/V projection (own pipelined pallas_call; removes the per-batch
    # serial bubble from the main kernel and the q-axis scratch carry) ---
    kv_tile = q_tile
    kv_kernel = functools.partial(_kv_proj_kernel, compute_dtype=compute_dtype)
    k, v = pl.pallas_call(
        kv_kernel,
        grid=(B, S // kv_tile),
        in_specs=[pl.BlockSpec((1, kv_tile, H), lambda b, s: (b, s, 0))]
                 + [const_spec(p) for p in kv_weights],
        out_specs=[pl.BlockSpec((1, kv_tile, H), lambda b, s: (b, s, 0)),
                   pl.BlockSpec((1, kv_tile, H), lambda b, s: (b, s, 0))],
        out_shape=(jax.ShapeDtypeStruct((B, S, H), x.dtype),
                   jax.ShapeDtypeStruct((B, S, H), x.dtype)),
        compiler_params=compiler,
    )(x, *kv_weights)

    # --- main fused transformer-block kernel ---
    in_specs = [
        pl.BlockSpec((1, q_tile, H), lambda b, q: (b, q, 0)),       # x q-row tile
        pl.BlockSpec((1, S, H), lambda b, q: (b, 0, 0)),            # K (per-batch resident)
        pl.BlockSpec((1, S, H), lambda b, q: (b, 0, 0)),            # V (per-batch resident)
    ] + [const_spec(p) for p in main_weights]

    out_specs = [
        pl.BlockSpec((1, q_tile, H), lambda b, q: (b, q, 0)),
        pl.BlockSpec((1, num_heads, q_tile, S), lambda b, q: (b, 0, q, 0)),
    ]
    out_shape = (
        jax.ShapeDtypeStruct((B, S, H), x.dtype),
        jax.ShapeDtypeStruct((B, num_heads, S, S), attn_weights_dtype),
    )
    kernel = functools.partial(
        _viral_block_kernel, num_heads=num_heads, head_dim=head_dim,
        compute_dtype=compute_dtype,
    )
    return pl.pallas_call(
        kernel,
        grid=(B, nq),
        in_specs=in_specs,
        out_specs=out_specs,
        out_shape=out_shape,
        scratch_shapes=[pltpu.VMEM((q_tile, H), compute_dtype)],    # head-output slab
        compiler_params=compiler,
    )(x, k, v, *main_weights)


# ---------------------------------------------------------------------------
# Reference + test
# ---------------------------------------------------------------------------
def _reference(x, params, *, num_heads, eps=1e-5):
    """Plain-JAX reference mirroring the PyTorch forward (eval mode)."""
    B, S, H = x.shape
    hd = H // num_heads
    x32 = x.astype(jnp.float32)

    def lin(a, w, b):
        return a @ w + b

    q = lin(x32, params["wq"], params["bq"]).reshape(B, S, num_heads, hd).transpose(0, 2, 1, 3)
    k = lin(x32, params["wk"], params["bk"]).reshape(B, S, num_heads, hd).transpose(0, 2, 1, 3)
    v = lin(x32, params["wv"], params["bv"]).reshape(B, S, num_heads, hd).transpose(0, 2, 1, 3)
    scores = jnp.einsum("bhqd,bhkd->bhqk", q, k) / (hd ** 0.5)
    attn_w = jax.nn.softmax(scores, axis=-1)
    attn = jnp.einsum("bhqk,bhkd->bhqd", attn_w, v).transpose(0, 2, 1, 3).reshape(B, S, H)
    attn = lin(attn, params["wo"], params["bo"])

    def layernorm(a, g, b):
        mu = a.mean(-1, keepdims=True)
        var = ((a - mu) ** 2).mean(-1, keepdims=True)
        return (a - mu) * lax.rsqrt(var + eps) * g + b

    h1 = layernorm(x32 + attn, params["g1"], params["be1"])
    f = jnp.maximum(lin(h1, params["w1"], params["b1"]), 0.0)
    f = lin(f, params["w2"], params["b2"])
    h2 = layernorm(h1 + f, params["g2"], params["be2"])
    return h2, attn_w


def _init_params(key, H):
    ks = jax.random.split(key, 12)
    s = 0.02
    return {
        "wq": jax.random.normal(ks[0], (H, H), jnp.float32) * s,
        "bq": jax.random.normal(ks[1], (1, H), jnp.float32) * s,
        "wk": jax.random.normal(ks[2], (H, H), jnp.float32) * s,
        "bk": jax.random.normal(ks[3], (1, H), jnp.float32) * s,
        "wv": jax.random.normal(ks[4], (H, H), jnp.float32) * s,
        "bv": jax.random.normal(ks[5], (1, H), jnp.float32) * s,
        "wo": jax.random.normal(ks[6], (H, H), jnp.float32) * s,
        "bo": jax.random.normal(ks[7], (1, H), jnp.float32) * s,
        "w1": jax.random.normal(ks[8], (H, 4 * H), jnp.float32) * s,
        "b1": jax.random.normal(ks[9], (1, 4 * H), jnp.float32) * s,
        "w2": jax.random.normal(ks[10], (4 * H, H), jnp.float32) * s,
        "b2": jax.random.normal(ks[11], (1, H), jnp.float32) * s,
        "g1": jnp.ones((1, H), jnp.float32),
        "be1": jnp.zeros((1, H), jnp.float32),
        "g2": jnp.ones((1, H), jnp.float32),
        "be2": jnp.zeros((1, H), jnp.float32),
    }


if __name__ == "__main__":
    B, S, H, NH = 2, 8, 64, 4   # small shapes: batch=2, seq=8, hidden=64, 4 heads

    key = jax.random.PRNGKey(0)
    kx, kp = jax.random.split(key)
    x = jax.random.normal(kx, (B, S, H), jnp.float32)
    params = _init_params(kp, H)

    try:
        out, attn_w = viral_detector_layer(x, params, num_heads=NH)
        out = jax.block_until_ready(out)
        attn_w = jax.block_until_ready(attn_w)
    except Exception:
        # Fall back to default (double-buffered) weight BlockSpecs if
        # single-buffering via pipeline_mode is rejected by this JAX build.
        out, attn_w = viral_detector_layer(x, params, num_heads=NH,
                                           single_buffer_weights=False)
        out = jax.block_until_ready(out)
        attn_w = jax.block_until_ready(attn_w)

    ref_out, ref_attn = _reference(x, params, num_heads=NH)
    assert out.shape == (B, S, H) and attn_w.shape == (B, NH, S, S)
    assert jnp.allclose(out, ref_out, atol=1e-3, rtol=1e-3)
    assert jnp.allclose(attn_w, ref_attn, atol=1e-3, rtol=1e-3)

    print("KERNEL_OK")
</pallas_src>

<mosaic_0001>
module attributes {stable_mosaic.version = 11 : i64} {
  func.func @_kv_proj_kernel(%arg0: i32, %arg1: i32, %arg2: memref<1x8x64xf32, #tpu.memory_space<vmem>>, %arg3: memref<64x64xf32, #tpu.memory_space<vmem>>, %arg4: memref<1x64xf32, #tpu.memory_space<vmem>>, %arg5: memref<64x64xf32, #tpu.memory_space<vmem>>, %arg6: memref<1x64xf32, #tpu.memory_space<vmem>>, %arg7: memref<1x8x64xf32, #tpu.memory_space<vmem>>, %arg8: memref<1x8x64xf32, #tpu.memory_space<vmem>>) attributes {dimension_semantics = [#tpu.dimension_semantics<parallel>, #tpu.dimension_semantics<parallel>], iteration_bounds = array<i64: 2, 1>, scalar_prefetch = 0 : i64, scratch_operands = 0 : i64, tpu.core_type = #tpu.core_type<tc>, window_params = [{transform_indices = @transform_0, window_bounds = array<i64: 1, 8, 64>}, {pipeline_mode = #tpu.pipeline_mode<synchronous>, transform_indices = @transform_1, window_bounds = array<i64: 64, 64>}, {pipeline_mode = #tpu.pipeline_mode<synchronous>, transform_indices = @transform_2, window_bounds = array<i64: 1, 64>}, {pipeline_mode = #tpu.pipeline_mode<synchronous>, transform_indices = @transform_3, window_bounds = array<i64: 64, 64>}, {pipeline_mode = #tpu.pipeline_mode<synchronous>, transform_indices = @transform_4, window_bounds = array<i64: 1, 64>}, {transform_indices = @transform_5, window_bounds = array<i64: 1, 8, 64>}, {transform_indices = @transform_6, window_bounds = array<i64: 1, 8, 64>}]} {
    %c0 = arith.constant 0 : index
    %c0_0 = arith.constant 0 : index
    %c0_1 = arith.constant 0 : index
    %0 = vector.load %arg2[%c0, %c0_0, %c0_1] : memref<1x8x64xf32, #tpu.memory_space<vmem>>, vector<1x8x64xf32>
    %1 = vector.shape_cast %0 : vector<1x8x64xf32> to vector<8x64xf32>
    %c0_2 = arith.constant 0 : index
    %c0_3 = arith.constant 0 : index
    %2 = vector.load %arg3[%c0_2, %c0_3] : memref<64x64xf32, #tpu.memory_space<vmem>>, vector<64x64xf32>
    %cst = arith.constant dense<0.000000e+00> : vector<8x64xf32>
    %3 = tpu.matmul %1, %2, %cst {dimension_numbers = #tpu.dot_dimension_numbers<[1], [0], [0], [1], [0, 0, 1, 1], [], []>} : vector<8x64xf32>, vector<64x64xf32>, vector<8x64xf32> -> vector<8x64xf32>
    %c0_4 = arith.constant 0 : index
    %c0_5 = arith.constant 0 : index
    %4 = vector.load %arg4[%c0_4, %c0_5] : memref<1x64xf32, #tpu.memory_space<vmem>>, vector<1x64xf32>
    %5 = vector.broadcast %4 : vector<1x64xf32> to vector<8x64xf32>
    %6 = arith.addf %3, %5 : vector<8x64xf32>
    %c0_6 = arith.constant 0 : index
    %c0_7 = arith.constant 0 : index
    %7 = vector.load %arg5[%c0_6, %c0_7] : memref<64x64xf32, #tpu.memory_space<vmem>>, vector<64x64xf32>
    %cst_8 = arith.constant dense<0.000000e+00> : vector<8x64xf32>
    %8 = tpu.matmul %1, %7, %cst_8 {dimension_numbers = #tpu.dot_dimension_numbers<[1], [0], [0], [1], [0, 0, 1, 1], [], []>} : vector<8x64xf32>, vector<64x64xf32>, vector<8x64xf32> -> vector<8x64xf32>
    %c0_9 = arith.constant 0 : index
    %c0_10 = arith.constant 0 : index
    %9 = vector.load %arg6[%c0_9, %c0_10] : memref<1x64xf32, #tpu.memory_space<vmem>>, vector<1x64xf32>
    %10 = vector.broadcast %9 : vector<1x64xf32> to vector<8x64xf32>
    %11 = arith.addf %8, %10 : vector<8x64xf32>
    %c0_11 = arith.constant 0 : index
    %c0_12 = arith.constant 0 : index
    %c0_13 = arith.constant 0 : index
    %12 = vector.load %arg7[%c0_11, %c0_12, %c0_13] : memref<1x8x64xf32, #tpu.memory_space<vmem>>, vector<1x8x64xf32>
    %13 = vector.shape_cast %12 : vector<1x8x64xf32> to vector<8x64xf32>
    %14 = vector.shape_cast %6 : vector<8x64xf32> to vector<1x8x64xf32>
    tpu.vector_store %arg7[%c0_11, %c0_12, %c0_13], %14 {strides = array<i32>} : memref<1x8x64xf32, #tpu.memory_space<vmem>>, vector<1x8x64xf32>,
    %c0_14 = arith.constant 0 : index
    %c0_15 = arith.constant 0 : index
    %c0_16 = arith.constant 0 : index
    %15 = vector.load %arg8[%c0_14, %c0_15, %c0_16] : memref<1x8x64xf32, #tpu.memory_space<vmem>>, vector<1x8x64xf32>
    %16 = vector.shape_cast %15 : vector<1x8x64xf32> to vector<8x64xf32>
    %17 = vector.shape_cast %11 : vector<8x64xf32> to vector<1x8x64xf32>
    tpu.vector_store %arg8[%c0_14, %c0_15, %c0_16], %17 {strides = array<i32>} : memref<1x8x64xf32, #tpu.memory_space<vmem>>, vector<1x8x64xf32>,
    return
  }
  func.func @transform_0(%arg0: i32, %arg1: i32) -> (i32, i32, i32) {
    %c0_i32 = arith.constant 0 : i32
    %c0_i32_0 = arith.constant 0 : i32
    return %arg0, %arg1, %c0_i32 : i32, i32, i32
  }
  func.func @transform_1(%arg0: i32, %arg1: i32) -> (i32, i32) {
    %c0_i32 = arith.constant 0 : i32
    %c0_i32_0 = arith.constant 0 : i32
    %c0_i32_1 = arith.constant 0 : i32
    return %c0_i32, %c0_i32_0 : i32, i32
  }
  func.func @transform_2(%arg0: i32, %arg1: i32) -> (i32, i32) {
    %c0_i32 = arith.constant 0 : i32
    %c0_i32_0 = arith.constant 0 : i32
    %c0_i32_1 = arith.constant 0 : i32
    return %c0_i32, %c0_i32_0 : i32, i32
  }
  func.func @transform_3(%arg0: i32, %arg1: i32) -> (i32, i32) {
    %c0_i32 = arith.constant 0 : i32
    %c0_i32_0 = arith.constant 0 : i32
    %c0_i32_1 = arith.constant 0 : i32
    return %c0_i32, %c0_i32_0 : i32, i32
  }
  func.func @transform_4(%arg0: i32, %arg1: i32) -> (i32, i32) {
    %c0_i32 = arith.constant 0 : i32
    %c0_i32_0 = arith.constant 0 : i32
    %c0_i32_1 = arith.constant 0 : i32
    return %c0_i32, %c0_i32_0 : i32, i32
  }
  func.func @transform_5(%arg0: i32, %arg1: i32) -> (i32, i32, i32) {
    %c0_i32 = arith.constant 0 : i32
    %c0_i32_0 = arith.constant 0 : i32
    return %arg0, %arg1, %c0_i32 : i32, i32, i32
  }
  func.func @transform_6(%arg0: i32, %arg1: i32) -> (i32, i32, i32) {
    %c0_i32 = arith.constant 0 : i32
    %c0_i32_0 = arith.constant 0 : i32
    return %arg0, %arg1, %c0_i32 : i32, i32, i32
  }
}

module attributes {stable_mosaic.version = 11 : i64} {
  func.func @_kv_proj_kernel(%arg0: i32, %arg1: i32, %arg2: memref<1x8x64xf32, #tpu.memory_space<vmem>>, %arg3: memref<64x64xf32, #tpu.memory_space<vmem>>, %arg4: memref<1x64xf32, #tpu.memory_space<vmem>>, %arg5: memref<64x64xf32, #tpu.memory_space<vmem>>, %arg6: memref<1x64xf32, #tpu.memory_space<vmem>>, %arg7: memref<1x8x64xf32, #tpu.memory_space<vmem>>, %arg8: memref<1x8x64xf32, #tpu.memory_space<vmem>>) attributes {dimension_semantics = [#tpu.dimension_semantics<parallel>, #tpu.dimension_semantics<parallel>], iteration_bounds = array<i64: 2, 1>, scalar_prefetch = 0 : i64, scratch_operands = 0 : i64, tpu.core_type = #tpu.core_type<tc>, window_params = [{transform_indices = @transform_0, window_bounds = array<i64: 1, 8, 64>}, {pipeline_mode = #tpu.pipeline_mode<synchronous>, transform_indices = @transform_1, window_bounds = array<i64: 64, 64>}, {pipeline_mode = #tpu.pipeline_mode<synchronous>, transform_indices = @transform_2, window_bounds = array<i64: 1, 64>}, {pipeline_mode = #tpu.pipeline_mode<synchronous>, transform_indices = @transform_3, window_bounds = array<i64: 64, 64>}, {pipeline_mode = #tpu.pipeline_mode<synchronous>, transform_indices = @transform_4, window_bounds = array<i64: 1, 64>}, {transform_indices = @transform_5, window_bounds = array<i64: 1, 8, 64>}, {transform_indices = @transform_6, window_bounds = array<i64: 1, 8, 64>}]} {
    %c0 = arith.constant 0 : index
    %c0_0 = arith.constant 0 : index
    %c0_1 = arith.constant 0 : index
    %0 = vector.load %arg2[%c0, %c0_0, %c0_1] : memref<1x8x64xf32, #tpu.memory_space<vmem>>, vector<1x8x64xf32>
    %1 = vector.shape_cast %0 : vector<1x8x64xf32> to vector<8x64xf32>
    %c0_2 = arith.constant 0 : index
    %c0_3 = arith.constant 0 : index
    %2 = vector.load %arg3[%c0_2, %c0_3] : memref<64x64xf32, #tpu.memory_space<vmem>>, vector<64x64xf32>
    %cst = arith.constant dense<0.000000e+00> : vector<8x64xf32>
    %3 = tpu.matmul %1, %2, %cst {dimension_numbers = #tpu.dot_dimension_numbers<[1], [0], [0], [1], [0, 0, 1, 1], [], []>} : vector<8x64xf32>, vector<64x64xf32>, vector<8x64xf32> -> vector<8x64xf32>
    %c0_4 = arith.constant 0 : index
    %c0_5 = arith.constant 0 : index
    %4 = vector.load %arg4[%c0_4, %c0_5] : memref<1x64xf32, #tpu.memory_space<vmem>>, vector<1x64xf32>
    %5 = vector.broadcast %4 : vector<1x64xf32> to vector<8x64xf32>
    %6 = arith.addf %3, %5 : vector<8x64xf32>
    %c0_6 = arith.constant 0 : index
    %c0_7 = arith.constant 0 : index
    %7 = vector.load %arg5[%c0_6, %c0_7] : memref<64x64xf32, #tpu.memory_space<vmem>>, vector<64x64xf32>
    %cst_8 = arith.constant dense<0.000000e+00> : vector<8x64xf32>
    %8 = tpu.matmul %1, %7, %cst_8 {dimension_numbers = #tpu.dot_dimension_numbers<[1], [0], [0], [1], [0, 0, 1, 1], [], []>} : vector<8x64xf32>, vector<64x64xf32>, vector<8x64xf32> -> vector<8x64xf32>
    %c0_9 = arith.constant 0 : index
    %c0_10 = arith.constant 0 : index
    %9 = vector.load %arg6[%c0_9, %c0_10] : memref<1x64xf32, #tpu.memory_space<vmem>>, vector<1x64xf32>
    %10 = vector.broadcast %9 : vector<1x64xf32> to vector<8x64xf32>
    %11 = arith.addf %8, %10 : vector<8x64xf32>
    %c0_11 = arith.constant 0 : index
    %c0_12 = arith.constant 0 : index
    %c0_13 = arith.constant 0 : index
    %12 = vector.load %arg7[%c0_11, %c0_12, %c0_13] : memref<1x8x64xf32, #tpu.memory_space<vmem>>, vector<1x8x64xf32>
    %13 = vector.shape_cast %12 : vector<1x8x64xf32> to vector<8x64xf32>
    %14 = vector.shape_cast %6 : vector<8x64xf32> to vector<1x8x64xf32>
    tpu.vector_store %arg7[%c0_11, %c0_12, %c0_13], %14 {strides = array<i32>} : memref<1x8x64xf32, #tpu.memory_space<vmem>>, vector<1x8x64xf32>,
    %c0_14 = arith.constant 0 : index
    %c0_15 = arith.constant 0 : index
    %c0_16 = arith.constant 0 : index
    %15 = vector.load %arg8[%c0_14, %c0_15, %c0_16] : memref<1x8x64xf32, #tpu.memory_space<vmem>>, vector<1x8x64xf32>
    %16 = vector.shape_cast %15 : vector<1x8x64xf32> to vector<8x64xf32>
    %17 = vector.shape_cast %11 : vector<8x64xf32> to vector<1x8x64xf32>
    tpu.vector_store %arg8[%c0_14, %c0_15, %c0_16], %17 {strides = array<i32>} : memref<1x8x64xf32, #tpu.memory_space<vmem>>, vector<1x8x64xf32>,
    return
  }
  func.func @transform_0(%arg0: i32, %arg1: i32) -> (i32, i32, i32) {
    %c0_i32 = arith.constant 0 : i32
    %c0_i32_0 = arith.constant 0 : i32
    return %arg0, %arg1, %c0_i32 : i32, i32, i32
  }
  func.func @transform_1(%arg0: i32, %arg1: i32) -> (i32, i32) {
    %c0_i32 = arith.constant 0 : i32
    %c0_i32_0 = arith.constant 0 : i32
    %c0_i32_1 = arith.constant 0 : i32
    return %c0_i32, %c0_i32_0 : i32, i32
  }
  func.func @transform_2(%arg0: i32, %arg1: i32) -> (i32, i32) {
    %c0_i32 = arith.constant 0 : i32
    %c0_i32_0 = arith.constant 0 : i32
    %c0_i32_1 = arith.constant 0 : i32
    return %c0_i32, %c0_i32_0 : i32, i32
  }
  func.func @transform_3(%arg0: i32, %arg1: i32) -> (i32, i32) {
    %c0_i32 = arith.constant 0 : i32
    %c0_i32_0 = arith.constant 0 : i32
    %c0_i32_1 = arith.constant 0 : i32
    return %c0_i32, %c0_i32_0 : i32, i32
  }
  func.func @transform_4(%arg0: i32, %arg1: i32) -> (i32, i32) {
    %c0_i32 = arith.constant 0 : i32
    %c0_i32_0 = arith.constant 0 : i32
    %c0_i32_1 = arith.constant 0 : i32
    return %c0_i32, %c0_i32_0 : i32, i32
  }
  func.func @transform_5(%arg0: i32, %arg1: i32) -> (i32, i32, i32) {
    %c0_i32 = arith.constant 0 : i32
    %c0_i32_0 = arith.constant 0 : i32
    return %arg0, %arg1, %c0_i32 : i32, i32, i32
  }
  func.func @transform_6(%arg0: i32, %arg1: i32) -> (i32, i32, i32) {
    %c0_i32 = arith.constant 0 : i32
    %c0_i32_0 = arith.constant 0 : i32
    return %arg0, %arg1, %c0_i32 : i32, i32, i32
  }
}

</mosaic_0001>

<llo_original>
// kernel: tpu_custom_call.1
$region0: #{tpu_custom_call.1}
  #allocation0 [shape = 'u32[]', space=smem, size = 0x4, offset = 0x4, fixed_abs, tag = 'smem constant byte address 0x4 - core index']
  #allocation1 [shape = 'u32[144,128]{1,0:T(1,128)}', space=vmem, size = 0x12000, scoped, tag = 'internal scratch']
  %s0 = inlined_call_operand.hbm [shape: f32[2,8,64], index: 0, kind: input, shape index: {}]
  %s1 = inlined_call_operand.hbm [shape: f32[64,64], index: 1, kind: input, shape index: {}]
  %s2 = inlined_call_operand.vmem [shape: f32[1,64], index: 2, kind: input, shape index: {}]
  %s3 = inlined_call_operand.hbm [shape: f32[64,64], index: 3, kind: input, shape index: {}]
  %s4 = inlined_call_operand.vmem [shape: f32[1,64], index: 4, kind: input, shape index: {}]
  %s5 = inlined_call_operand.hbm [shape: f32[2,8,64], index: 5, kind: output, shape index: {0}]
  %s6 = inlined_call_operand.hbm [shape: f32[2,8,64], index: 6, kind: output, shape index: {1}]
  %7 = xla_tuple %s5, %s6
  %s8 = sld [smem:[#allocation0]]
  $region73: #{tpu_custom_call.1} parent=0
    _
  %s10 = ssub.s32 1, %s8
  %s11 = scalar_select 0, %s10, %s8
  $region1: #{tpu_custom_call.1} parent=0
    #allocation2 [shape = 'u8[8192]{0}', space=vmem, size = 0x2000, scoped, tag = 'input window, operand 0']
    #allocation3 [shape = 's32[2]{0}', space=sflag, size = 0x8, scoped, tag = 'scoped memory for tpu_custom_call.1']
    #allocation4 [shape = 's32[2]{0}', space=sflag, size = 0x8, scoped, tag = 'scoped memory for tpu_custom_call.1']
    #allocation5 [shape = 'u8[32768]{0}', space=vmem, size = 0x8000, scoped, tag = 'input window, operand 1, single buffered']
    #allocation6 [shape = 's32[1]{0}', space=sflag, size = 0x4, scoped, tag = 'scoped memory for tpu_custom_call.1']
    #allocation7 [shape = 'u8[32768]{0}', space=vmem, size = 0x8000, scoped, tag = 'input window, operand 3, single buffered']
    #allocation8 [shape = 'u8[8192]{0}', space=vmem, size = 0x2000, scoped, tag = 'output window, operand 0']
    #allocation9 [shape = 'u8[8192]{0}', space=vmem, size = 0x2000, scoped, tag = 'output window, operand 1']
    #allocation10 [shape = 's32[2]{0}', space=sflag, size = 0x8, scoped, tag = 'scoped memory for tpu_custom_call.1']
    %12 = vsyncpa [#allocation3], 0
    %s13 = scalar_lea.sflag [#allocation3], 1
    %14 = vsyncpa %s13, 0
    %15 = vsyncpa [#allocation6], 0
    %16 = vsyncpa [#allocation4], 0
    %s17 = scalar_lea.sflag [#allocation4], 1
    %18 = vsyncpa %s17, 0
    %19 = vsyncpa [#allocation10], 0
    %s20 = scalar_lea.sflag [#allocation10], 1
    %21 = vsyncpa %s20, 0
    loop: start=0, step=1, limit=4
    $region2: #{tpu_custom_call.1} parent=1 // loop_pre_header
      _
    $region3: #{tpu_custom_call.1} parent=1 // loop_header
      %s23 = sphi 0, %s27
      %p24 = scmp.ge.s32.totalorder %s23, 4
      %s30 = sphi 0, %s42
      %s31 = sphi 0, %s38
      %s32 = sphi 0, %s30
      %s33 = sphi 0, %s31
      %s34 = sphi 0, %s32
      %s35 = sphi 0, %s33
      %s47 = sphi 0, %s49
      %s50 = sphi 0, %s47
      %s51 = sphi 0, %s50
      %s67 = sphi 0, %s51
      %s71 = sphi 0, %s71
      %s73 = sphi 0, %s71
      %s74 = sphi 0, %s73
      %s88 = sphi 0, %s74
      %s92 = sphi 0, %s92
      %s94 = sphi 0, %s92
      %s95 = sphi 0, %s94
      %s109 = sphi 0, %s95
      %s113 = sphi 0, %s113
      %s115 = sphi 0, %s113
      %s116 = sphi 0, %s115
      %s130 = sphi 0, %s116
      %s134 = sphi 0, %s134
      %s136 = sphi 0, %s134
      %s137 = sphi 0, %s136
      %s151 = sphi 0, %s137
      %s159 = sphi 0, %s161
      %s162 = sphi 0, %s159
      %s163 = sphi 0, %s162
      %s179 = sphi 0, %s163
      %s187 = sphi 0, %s189
      %s190 = sphi 0, %s187
      %s191 = sphi 0, %s190
      %s207 = sphi 0, %s191
    $region4: #{tpu_custom_call.1} parent=1 // loop_header_branch
      %26 = sbr.rel (%p24) target = $region8
    $region5: #{tpu_custom_call.1} parent=1 // loop_body
      %s28 = ssub.s32 %s23, 1
      %s29 = ssub.s32 %s23, 2
      %s36 = sadd.s32 1, %s31
      %p37 = scmp.ge.s32.totalorder %s36, 1
      %s38 = scalar_select %p37, 0, %s36
      %s39 = sadd.s32 1, %s30
      %s40 = scalar_select %p37, %s39, %s30
      %p41 = scmp.ge.s32.totalorder %s40, 2
      %s42 = scalar_select %p41, 0, %s40
      %s43 = ssub.s32 %s30, %s42
      %s44 = ssub.s32 %s31, %s38
      %s45 = sor.u32 %s43, %s44
      %p46 = scmp.eq.s32.totalorder %s45, 0
      %s48 = sadd.s32 %s47, 1
      %s49 = scalar_select %p46, %s47, %s48
      %p52 = pneg %p46
      %p53 = scmp.eq.s32.totalorder %s23, 1
      %p54 = por %p52, %p53
      %p55 = scmp.ne.s32.totalorder %s47, %s50
      %p56 = scmp.eq.s32.totalorder %s23, 0
      %p57 = por %p55, %p56
      %p58 = scmp.ne.s32.totalorder %s47, %s50
      %p59 = scmp.eq.s32.totalorder %s28, 1
      %p60 = por %p58, %p59
      %p61 = scmp.ne.s32.totalorder %s50, %s51
      %p62 = scmp.eq.s32.totalorder %s28, 0
      %p63 = por %p61, %p62
      %p64 = scmp.ne.s32.totalorder %s50, %s51
      %p65 = scmp.eq.s32.totalorder %s29, 1
      %p66 = por %p64, %p65
      %p68 = scmp.ne.s32.totalorder %s51, %s67
      %p69 = scmp.eq.s32.totalorder %s29, 0
      %p70 = por %p68, %p69
      %s72 = sadd.s32 %s71, 1
      %p75 = scmp.eq.s32.totalorder %s23, 1
      %p76 = scmp.ne.s32.totalorder %s71, %s73
      %p77 = scmp.eq.s32.totalorder %s23, 0
      %p78 = por %p76, %p77
      %p79 = scmp.ne.s32.totalorder %s71, %s73
      %p80 = scmp.eq.s32.totalorder %s28, 1
      %p81 = por %p79, %p80
      %p82 = scmp.ne.s32.totalorder %s73, %s74
      %p83 = scmp.eq.s32.totalorder %s28, 0
      %p84 = por %p82, %p83
      %p85 = scmp.ne.s32.totalorder %s73, %s74
      %p86 = scmp.eq.s32.totalorder %s29, 1
      %p87 = por %p85, %p86
      %p89 = scmp.ne.s32.totalorder %s74, %s88
      %p90 = scmp.eq.s32.totalorder %s29, 0
      %p91 = por %p89, %p90
      %s93 = sadd.s32 %s92, 1
      %p96 = scmp.eq.s32.totalorder %s23, 1
      %p97 = scmp.ne.s32.totalorder %s92, %s94
      %p98 = scmp.eq.s32.totalorder %s23, 0
      %p99 = por %p97, %p98
      %p100 = scmp.ne.s32.totalorder %s92, %s94
      %p101 = scmp.eq.s32.totalorder %s28, 1
      %p102 = por %p100, %p101
      %p103 = scmp.ne.s32.totalorder %s94, %s95
      %p104 = scmp.eq.s32.totalorder %s28, 0
      %p105 = por %p103, %p104
      %p106 = scmp.ne.s32.totalorder %s94, %s95
      %p107 = scmp.eq.s32.totalorder %s29, 1
      %p108 = por %p106, %p107
      %p110 = scmp.ne.s32.totalorder %s95, %s109
      %p111 = scmp.eq.s32.totalorder %s29, 0
      %p112 = por %p110, %p111
      %s114 = sadd.s32 %s113, 1
      %p117 = scmp.eq.s32.totalorder %s23, 1
      %p118 = scmp.ne.s32.totalorder %s113, %s115
      %p119 = scmp.eq.s32.totalorder %s23, 0
      %p120 = por %p118, %p119
      %p121 = scmp.ne.s32.totalorder %s113, %s115
      %p122 = scmp.eq.s32.totalorder %s28, 1
      %p123 = por %p121, %p122
      %p124 = scmp.ne.s32.totalorder %s115, %s116
      %p125 = scmp.eq.s32.totalorder %s28, 0
      %p126 = por %p124, %p125
      %p127 = scmp.ne.s32.totalorder %s115, %s116
      %p128 = scmp.eq.s32.totalorder %s29, 1
      %p129 = por %p127, %p128
      %p131 = scmp.ne.s32.totalorder %s116, %s130
      %p132 = scmp.eq.s32.totalorder %s29, 0
      %p133 = por %p131, %p132
      %s135 = sadd.s32 %s134, 1
      %p138 = scmp.eq.s32.totalorder %s23, 1
      %p139 = scmp.ne.s32.totalorder %s134, %s136
      %p140 = scmp.eq.s32.totalorder %s23, 0
      %p141 = por %p139, %p140
      %p142 = scmp.ne.s32.totalorder %s134, %s136
      %p143 = scmp.eq.s32.totalorder %s28, 1
      %p144 = por %p142, %p143
      %p145 = scmp.ne.s32.totalorder %s136, %s137
      %p146 = scmp.eq.s32.totalorder %s28, 0
      %p147 = por %p145, %p146
      %p148 = scmp.ne.s32.totalorder %s136, %s137
      %p149 = scmp.eq.s32.totalorder %s29, 1
      %p150 = por %p148, %p149
      %p152 = scmp.ne.s32.totalorder %s137, %s151
      %p153 = scmp.eq.s32.totalorder %s29, 0
      %p154 = por %p152, %p153
      %s155 = ssub.s32 %s30, %s42
      %s156 = ssub.s32 %s31, %s38
      %s157 = sor.u32 %s155, %s156
      %p158 = scmp.eq.s32.totalorder %s157, 0
      %s160 = sadd.s32 %s159, 1
      %s161 = scalar_select %p158, %s159, %s160
      %p164 = pneg %p158
      %p165 = scmp.eq.s32.totalorder %s23, 1
      %p166 = por %p164, %p165
      %p167 = scmp.ne.s32.totalorder %s159, %s162
      %p168 = scmp.eq.s32.totalorder %s23, 0
      %p169 = por %p167, %p168
      %p170 = scmp.ne.s32.totalorder %s159, %s162
      %p171 = scmp.eq.s32.totalorder %s28, 1
      %p172 = por %p170, %p171
      %p173 = scmp.ne.s32.totalorder %s162, %s163
      %p174 = scmp.eq.s32.totalorder %s28, 0
      %p175 = por %p173, %p174
      %p176 = scmp.ne.s32.totalorder %s162, %s163
      %p177 = scmp.eq.s32.totalorder %s29, 1
      %p178 = por %p176, %p177
      %p180 = scmp.ne.s32.totalorder %s163, %s179
      %p181 = scmp.eq.s32.totalorder %s29, 0
      %p182 = por %p180, %p181
      %s183 = ssub.s32 %s30, %s42
      %s184 = ssub.s32 %s31, %s38
      %s185 = sor.u32 %s183, %s184
      %p186 = scmp.eq.s32.totalorder %s185, 0
      %s188 = sadd.s32 %s187, 1
      %s189 = scalar_select %p186, %s187, %s188
      %p192 = pneg %p186
      %p193 = scmp.eq.s32.totalorder %s23, 1
      %p194 = por %p192, %p193
      %p195 = scmp.ne.s32.totalorder %s187, %s190
      %p196 = scmp.eq.s32.totalorder %s23, 0
      %p197 = por %p195, %p196
      %p198 = scmp.ne.s32.totalorder %s187, %s190
      %p199 = scmp.eq.s32.totalorder %s28, 1
      %p200 = por %p198, %p199
      %p201 = scmp.ne.s32.totalorder %s190, %s191
      %p202 = scmp.eq.s32.totalorder %s28, 0
      %p203 = por %p201, %p202
      %p204 = scmp.ne.s32.totalorder %s190, %s191
      %p205 = scmp.eq.s32.totalorder %s29, 1
      %p206 = por %p204, %p205
      %p208 = scmp.ne.s32.totalorder %s191, %s207
      %p209 = scmp.eq.s32.totalorder %s29, 0
      %p210 = por %p208, %p209
      %p211 = scmp.le.s32.totalorder 1, %s23
      %p212 = scmp.lt.s32.totalorder %s23, 3
      %p213 = pnand %p211, %p212
      %p214 = pneg %p213
      // Predicated region
      $region9: #{tpu_custom_call.1} parent=5 // pred_check
        _
      $region10: #{tpu_custom_call.1} parent=5 // pred_check_branch
        %216 = sbr.rel (%p213) target = $region12
      $region11: #{tpu_custom_call.1} parent=5 // pred_region
        %s217 = ssub.s32 %s23, 1
        // Predicated region
        $region13: #{tpu_custom_call.1} parent=11 // pred_check
          %p218 = pneg %p84
        $region14: #{tpu_custom_call.1} parent=11 // pred_check_branch
          %220 = sbr.rel (%p218) target = $region16
        $region15: #{tpu_custom_call.1} parent=11 // pred_region
          %s222 = ssub.s32 1024, 1024
          %223 = vsyncadd [#allocation6], %s222
          %s224 = sshll.u32 [#allocation5], 4
          %s225 = int_to_ptr.vmem [resolvable:$true] %s224
          %230 = dma.hbm_to_vmem [thread:$0]  %s1, 1024, %s225, [#allocation6], 128, 128, 8
        $region16: #{tpu_custom_call.1} parent=11 // pred_fallthru
          _
        // Predicated region
        $region17: #{tpu_custom_call.1} parent=11 // pred_check
          %p231 = pneg %p105
        $region18: #{tpu_custom_call.1} parent=11 // pred_check_branch
          %233 = sbr.rel (%p231) target = $region20
        $region19: #{tpu_custom_call.1} parent=11 // pred_region
          _
        $region20: #{tpu_custom_call.1} parent=11 // pred_fallthru
          _
        // Predicated region
        $region21: #{tpu_custom_call.1} parent=11 // pred_check
          %p234 = pneg %p126
        $region22: #{tpu_custom_call.1} parent=11 // pred_check_branch
          %236 = sbr.rel (%p234) target = $region24
        $region23: #{tpu_custom_call.1} parent=11 // pred_region
          %s238 = ssub.s32 1024, 1024
          %239 = vsyncadd [#allocation6], %s238
          %s240 = sshll.u32 [#allocation7], 4
          %s241 = int_to_ptr.vmem [resolvable:$true] %s240
          %246 = dma.hbm_to_vmem [thread:$0]  %s3, 1024, %s241, [#allocation6], 128, 128, 8
        $region24: #{tpu_custom_call.1} parent=11 // pred_fallthru
          _
        // Predicated region
        $region25: #{tpu_custom_call.1} parent=11 // pred_check
          %p247 = pneg %p147
        $region26: #{tpu_custom_call.1} parent=11 // pred_check_branch
          %249 = sbr.rel (%p247) target = $region28
        $region27: #{tpu_custom_call.1} parent=11 // pred_region
          _
        $region28: #{tpu_custom_call.1} parent=11 // pred_fallthru
          _
      $region12: #{tpu_custom_call.1} parent=5 // pred_fallthru
        _
      %p250 = scmp.lt.s32.totalorder %s23, 2
      // Predicated region
      $region29: #{tpu_custom_call.1} parent=5 // pred_check
        %p251 = pneg %p250
      $region30: #{tpu_custom_call.1} parent=5 // pred_check_branch
        %253 = sbr.rel (%p251) target = $region32
      $region31: #{tpu_custom_call.1} parent=5 // pred_region
        // Predicated region
        $region33: #{tpu_custom_call.1} parent=31 // pred_check
          %p254 = pneg %p57
        $region34: #{tpu_custom_call.1} parent=31 // pred_check_branch
          %256 = sbr.rel (%p254) target = $region36
        $region35: #{tpu_custom_call.1} parent=31 // pred_region
          %s257 = sand.u32 %s47, 1
          %s258 = scalar_lea.sflag [#allocation3], %s257
          %s259 = sand.u32 %s47, 1
          %s260 = smul.addr %s259, 8
          %s261 = scalar_lea.vmem [#allocation2], %s260
          %s263 = ssub.s32 128, 128
          %264 = vsyncadd %s258, %s263
          %s265 = sadd.s32 %s31, %s30
          %s266 = smul.addr %s265, 128
          %s267 = scalar_lea.hbm %s0, %s266
          %s269 = sshll.u32 %s261, 4
          %s270 = int_to_ptr.vmem [resolvable:$true] %s269
          %272 = dma.hbm_to_vmem [thread:$0]  %s267, 128, %s270, %s258
        $region36: #{tpu_custom_call.1} parent=31 // pred_fallthru
          _
      $region32: #{tpu_custom_call.1} parent=5 // pred_fallthru
        _
      %p273 = scmp.le.s32.totalorder 1, %s23
      %p274 = scmp.lt.s32.totalorder %s23, 3
      %p275 = pnand %p273, %p274
      %p276 = pneg %p275
      // Predicated region
      $region37: #{tpu_custom_call.1} parent=5 // pred_check
        _
      $region38: #{tpu_custom_call.1} parent=5 // pred_check_branch
        %278 = sbr.rel (%p275) target = $region40
      $region39: #{tpu_custom_call.1} parent=5 // pred_region
        %s279 = ssub.s32 %s23, 1
        %s280 = sand.u32 %s50, 1
        %s281 = scalar_lea.sflag [#allocation3], %s280
        %s282 = sand.u32 %s50, 1
        %s283 = smul.addr %s282, 8
        %s284 = scalar_lea.vmem [#allocation2], %s283
        // Predicated region
        $region41: #{tpu_custom_call.1} parent=39 // pred_check
          %p285 = pneg %p63
        $region42: #{tpu_custom_call.1} parent=39 // pred_check_branch
          %287 = sbr.rel (%p285) target = $region44
        $region43: #{tpu_custom_call.1} parent=39 // pred_region
          %288 = dma.done %s281, 128
        $region44: #{tpu_custom_call.1} parent=39 // pred_fallthru
          _
        // Predicated region
        $region45: #{tpu_custom_call.1} parent=39 // pred_check
          %p289 = pneg %p84
        $region46: #{tpu_custom_call.1} parent=39 // pred_check_branch
          %291 = sbr.rel (%p289) target = $region48
        $region47: #{tpu_custom_call.1} parent=39 // pred_region
          %292 = dma.done [#allocation6], 1024
        $region48: #{tpu_custom_call.1} parent=39 // pred_fallthru
          _
        // Predicated region
        $region49: #{tpu_custom_call.1} parent=39 // pred_check
          %p293 = pneg %p126
        $region50: #{tpu_custom_call.1} parent=39 // pred_check_branch
          %295 = sbr.rel (%p293) target = $region52
        $region51: #{tpu_custom_call.1} parent=39 // pred_region
          %296 = dma.done [#allocation6], 1024
        $region52: #{tpu_custom_call.1} parent=39 // pred_fallthru
          _
        %s297 = sand.u32 %s50, 1
        %s298 = scalar_lea.sflag [#allocation3], %s297
        %s299 = sand.u32 %s50, 1
        %s300 = smul.addr %s299, 8
        %s301 = scalar_lea.vmem [#allocation2], %s300
        %p302 = pneg %p63
        %p303 = pneg %p60
        %p304 = pneg %p84
        %p305 = pneg %p81
        %p306 = pneg %p105
        %p307 = pneg %p102
        %p308 = pneg %p126
        %p309 = pneg %p123
        %p310 = pneg %p147
        %p311 = pneg %p144
        %p312 = pneg %p175
        %p313 = pneg %p172
        %s314 = sand.u32 %s162, 1
        %s315 = scalar_lea.sflag [#allocation4], %s314
        %s316 = sand.u32 %s162, 1
        %s317 = smul.addr %s316, 8
        %s318 = scalar_lea.vmem [#allocation8], %s317
        %p319 = pneg %p203
        %p320 = pneg %p200
        %s321 = sand.u32 %s190, 1
        %s322 = scalar_lea.sflag [#allocation10], %s321
        %s323 = sand.u32 %s190, 1
        %s324 = smul.addr %s323, 8
        %s325 = scalar_lea.vmem [#allocation9], %s324
        %v326 = vld [vmem:[%s284] sm:$0xff]
        %v327 = vld [vmem:[#allocation5] sm:$0xff]
        %v328 = vld [vmem:[#allocation5 + $0x8] sm:$0xff]
        %v329 = vld [vmem:[#allocation5 + $0x10] sm:$0xff]
        %v330 = vld [vmem:[#allocation5 + $0x18] sm:$0xff]
        %v331 = vld [vmem:[#allocation5 + $0x20] sm:$0xff]
        %v332 = vld [vmem:[#allocation5 + $0x28] sm:$0xff]
        %v333 = vld [vmem:[#allocation5 + $0x30] sm:$0xff]
        %v334 = vld [vmem:[#allocation5 + $0x38] sm:$0xff]
        %v335 = vld [vmem:[%s2] sm:$0x1]
        %v337 = vlaneseq
        %v338 = vshrl.u32 %v337, 7
        %v339 = vsub.s32 0, %v338
        %v340 = vrot.slane %v335, %v339
        %vm342 = vcmask 523264
        %v344 = vsel %vm342, %v326, 0
        %346 = vmatprep.subr.mxu0 0.0
        %347 = vmatpush1.msra.mxu0 0.0
        %348 = vmatprep.subr.mxu0 0.0
        %349 = vmatpush1.msra.mxu0 0.0
        %350 = vmatprep.subr.mxu0 0.0
        %351 = vmatpush1.msra.mxu0 0.0
        %352 = vmatprep.subr.mxu0 0.0
        %353 = vmatpush1.msra.mxu0 0.0
        %354 = vmatprep.subr.mxu0 0.0
        %355 = vmatpush1.msra.mxu0 0.0
        %356 = vmatprep.subr.mxu0 0.0
        %357 = vmatpush1.msra.mxu0 0.0
        %358 = vmatprep.subr.mxu0 0.0
        %359 = vmatpush1.msra.mxu0 0.0
        %360 = vmatprep.subr.mxu0 0.0
        %361 = vmatpush1.msra.mxu0 0.0
        %362 = vmatprep.subr.mxu0 0.0
        %363 = vmatpush1.msra.mxu0 %v334
        %364 = vmatprep.subr.mxu0 0.0
        %365 = vmatpush1.msra.mxu0 %v333
        %366 = vmatprep.subr.mxu0 0.0
        %367 = vmatpush1.msra.mxu0 %v332
        %368 = vmatprep.subr.mxu0 0.0
        %369 = vmatpush1.msra.mxu0 %v331
        %370 = vmatprep.subr.mxu0 0.0
        %371 = vmatpush1.msra.mxu0 %v330
        %372 = vmatprep.subr.mxu0 0.0
        %373 = vmatpush1.msra.mxu0 %v329
        %374 = vmatprep.subr.mxu0 0.0
        %375 = vmatpush1.msra.mxu0 %v328
        %376 = vmatprep.subr.mxu0 0.0
        %377 = vmatpush1.msra.mxu0 %v327
        %378 = vmatprep.subr.mxu0 0.0
        %379 = vmatpush2.msra.mxu0 0.0
        %380 = vmatprep.subr.mxu0 0.0
        %381 = vmatpush2.msra.mxu0 0.0
        %382 = vmatprep.subr.mxu0 0.0
        %383 = vmatpush2.msra.mxu0 0.0
        %384 = vmatprep.subr.mxu0 0.0
        %385 = vmatpush2.msra.mxu0 0.0
        %386 = vmatprep.subr.mxu0 0.0
        %387 = vmatpush2.msra.mxu0 0.0
        %388 = vmatprep.subr.mxu0 0.0
        %389 = vmatpush2.msra.mxu0 0.0
        %390 = vmatprep.subr.mxu0 0.0
        %391 = vmatpush2.msra.mxu0 0.0
        %392 = vmatprep.subr.mxu0 0.0
        %393 = vmatpush2.msra.mxu0 0.0
        %394 = vmatprep.subr.mxu0 0.0
        %395 = vmatpush2.msra.mxu0 0.0
        %396 = vmatprep.subr.mxu0 0.0
        %397 = vmatpush2.msra.mxu0 0.0
        %398 = vmatprep.subr.mxu0 0.0
        %399 = vmatpush2.msra.mxu0 0.0
        %400 = vmatprep.subr.mxu0 0.0
        %401 = vmatpush2.msra.mxu0 0.0
        %402 = vmatprep.subr.mxu0 0.0
        %403 = vmatpush2.msra.mxu0 0.0
        %404 = vmatprep.subr.mxu0 0.0
        %405 = vmatpush2.msra.mxu0 0.0
        %406 = vmatprep.subr.mxu0 0.0
        %407 = vmatpush2.msra.mxu0 0.0
        %408 = vmatprep.subr.mxu0 0.0
        %409 = vmatpush2.msra.mxu0 0.0
        %410 = vmatprep.mubr.f32.mxu0 0.0
        %411 = vmatmul.mubr.f32.gmra.mxu0 %v344
        %v412 = vpop.f32.mrf.mxu0
        %v413 = vadd.f32 %v340, %v412
        %v414 = vpop.f32.mrf.mxu0
        %415 = vdwg.mxu0
        %v416 = vld [vmem:[#allocation7] sm:$0xff]
        %v417 = vld [vmem:[#allocation7 + $0x8] sm:$0xff]
        %v418 = vld [vmem:[#allocation7 + $0x10] sm:$0xff]
        %v419 = vld [vmem:[#allocation7 + $0x18] sm:$0xff]
        %v420 = vld [vmem:[#allocation7 + $0x20] sm:$0xff]
        %v421 = vld [vmem:[#allocation7 + $0x28] sm:$0xff]
        %v422 = vld [vmem:[#allocation7 + $0x30] sm:$0xff]
        %v423 = vld [vmem:[#allocation7 + $0x38] sm:$0xff]
        %v424 = vld [vmem:[%s4] sm:$0x1]
        %v426 = vlaneseq
        %v427 = vshrl.u32 %v426, 7
        %v428 = vsub.s32 0, %v427
        %v429 = vrot.slane %v424, %v428
        %431 = vmatprep.subr.mxu0 0.0
        %432 = vmatpush1.msra.mxu0 0.0
        %433 = vmatprep.subr.mxu0 0.0
        %434 = vmatpush1.msra.mxu0 0.0
        %435 = vmatprep.subr.mxu0 0.0
        %436 = vmatpush1.msra.mxu0 0.0
        %437 = vmatprep.subr.mxu0 0.0
        %438 = vmatpush1.msra.mxu0 0.0
        %439 = vmatprep.subr.mxu0 0.0
        %440 = vmatpush1.msra.mxu0 0.0
        %441 = vmatprep.subr.mxu0 0.0
        %442 = vmatpush1.msra.mxu0 0.0
        %443 = vmatprep.subr.mxu0 0.0
        %444 = vmatpush1.msra.mxu0 0.0
        %445 = vmatprep.subr.mxu0 0.0
        %446 = vmatpush1.msra.mxu0 0.0
        %447 = vmatprep.subr.mxu0 0.0
        %448 = vmatpush1.msra.mxu0 %v423
        %449 = vmatprep.subr.mxu0 0.0
        %450 = vmatpush1.msra.mxu0 %v422
        %451 = vmatprep.subr.mxu0 0.0
        %452 = vmatpush1.msra.mxu0 %v421
        %453 = vmatprep.subr.mxu0 0.0
        %454 = vmatpush1.msra.mxu0 %v420
        %455 = vmatprep.subr.mxu0 0.0
        %456 = vmatpush1.msra.mxu0 %v419
        %457 = vmatprep.subr.mxu0 0.0
        %458 = vmatpush1.msra.mxu0 %v418
        %459 = vmatprep.subr.mxu0 0.0
        %460 = vmatpush1.msra.mxu0 %v417
        %461 = vmatprep.subr.mxu0 0.0
        %462 = vmatpush1.msra.mxu0 %v416
        %463 = vmatprep.subr.mxu0 0.0
        %464 = vmatpush2.msra.mxu0 0.0
        %465 = vmatprep.subr.mxu0 0.0
        %466 = vmatpush2.msra.mxu0 0.0
        %467 = vmatprep.subr.mxu0 0.0
        %468 = vmatpush2.msra.mxu0 0.0
        %469 = vmatprep.subr.mxu0 0.0
        %470 = vmatpush2.msra.mxu0 0.0
        %471 = vmatprep.subr.mxu0 0.0
        %472 = vmatpush2.msra.mxu0 0.0
        %473 = vmatprep.subr.mxu0 0.0
        %474 = vmatpush2.msra.mxu0 0.0
        %475 = vmatprep.subr.mxu0 0.0
        %476 = vmatpush2.msra.mxu0 0.0
        %477 = vmatprep.subr.mxu0 0.0
        %478 = vmatpush2.msra.mxu0 0.0
        %479 = vmatprep.subr.mxu0 0.0
        %480 = vmatpush2.msra.mxu0 0.0
        %481 = vmatprep.subr.mxu0 0.0
        %482 = vmatpush2.msra.mxu0 0.0
        %483 = vmatprep.subr.mxu0 0.0
        %484 = vmatpush2.msra.mxu0 0.0
        %485 = vmatprep.subr.mxu0 0.0
        %486 = vmatpush2.msra.mxu0 0.0
        %487 = vmatprep.subr.mxu0 0.0
        %488 = vmatpush2.msra.mxu0 0.0
        %489 = vmatprep.subr.mxu0 0.0
        %490 = vmatpush2.msra.mxu0 0.0
        %491 = vmatprep.subr.mxu0 0.0
        %492 = vmatpush2.msra.mxu0 0.0
        %493 = vmatprep.subr.mxu0 0.0
        %494 = vmatpush2.msra.mxu0 0.0
        %495 = vmatprep.mubr.f32.mxu0 0.0
        %496 = vmatmul.mubr.f32.gmra.mxu0 %v344
        %v497 = vpop.f32.mrf.mxu0
        %v498 = vadd.f32 %v429, %v497
        %v499 = vpop.f32.mrf.mxu0
        %500 = vdwg.mxu0
        %501 = vst.msk [vmem:[%s318] sm:$0xff] %vm342, %v413
        %502 = vst.msk [vmem:[%s325] sm:$0xff] %vm342, %v498
        %s503 = sand.u32 %s162, 1
        %s504 = scalar_lea.sflag [#allocation4], %s503
        %s505 = sand.u32 %s162, 1
        %s506 = smul.addr %s505, 8
        %s507 = scalar_lea.vmem [#allocation8], %s506
        %s508 = sand.u32 %s190, 1
        %s509 = scalar_lea.sflag [#allocation10], %s508
        %s510 = sand.u32 %s190, 1
        %s511 = smul.addr %s510, 8
        %s512 = scalar_lea.vmem [#allocation9], %s511
        // Predicated region
        $region53: #{tpu_custom_call.1} parent=39 // pred_check
          %p513 = pneg %p172
        $region54: #{tpu_custom_call.1} parent=39 // pred_check_branch
          %515 = sbr.rel (%p513) target = $region56
        $region55: #{tpu_custom_call.1} parent=39 // pred_region
          %s517 = ssub.s32 128, 128
          %518 = vsyncadd %s504, %s517
          %s519 = sadd.s32 %s33, %s32
          %s520 = smul.addr %s519, 128
          %s521 = scalar_lea.hbm %s5, %s520
          %s523 = sshll.u32 %s507, 4
          %s524 = int_to_ptr.vmem [resolvable:$true] %s523
          %526 = dma.vmem_to_hbm [thread:$0]  %s524, 128, %s521, %s504
        $region56: #{tpu_custom_call.1} parent=39 // pred_fallthru
          _
        // Predicated region
        $region57: #{tpu_custom_call.1} parent=39 // pred_check
          %p527 = pneg %p200
        $region58: #{tpu_custom_call.1} parent=39 // pred_check_branch
          %529 = sbr.rel (%p527) target = $region60
        $region59: #{tpu_custom_call.1} parent=39 // pred_region
          %s531 = ssub.s32 128, 128
          %532 = vsyncadd %s509, %s531
          %s533 = sadd.s32 %s33, %s32
          %s534 = smul.addr %s533, 128
          %s535 = scalar_lea.hbm %s6, %s534
          %s537 = sshll.u32 %s512, 4
          %s538 = int_to_ptr.vmem [resolvable:$true] %s537
          %540 = dma.vmem_to_hbm [thread:$0]  %s538, 128, %s535, %s509
        $region60: #{tpu_custom_call.1} parent=39 // pred_fallthru
          _
      $region40: #{tpu_custom_call.1} parent=5 // pred_fallthru
        _
      %p541 = scmp.le.s32.totalorder 2, %s23
      // Predicated region
      $region61: #{tpu_custom_call.1} parent=5 // pred_check
        %p542 = pneg %p541
      $region62: #{tpu_custom_call.1} parent=5 // pred_check_branch
        %544 = sbr.rel (%p542) target = $region64
      $region63: #{tpu_custom_call.1} parent=5 // pred_region
        %s545 = ssub.s32 %s23, 2
        // Predicated region
        $region65: #{tpu_custom_call.1} parent=63 // pred_check
          %p546 = pneg %p178
        $region66: #{tpu_custom_call.1} parent=63 // pred_check_branch
          %548 = sbr.rel (%p546) target = $region68
        $region67: #{tpu_custom_call.1} parent=63 // pred_region
          %s549 = sand.u32 %s163, 1
          %s550 = scalar_lea.sflag [#allocation4], %s549
          %s551 = sand.u32 %s163, 1
          %s552 = smul.addr %s551, 8
          %s553 = scalar_lea.vmem [#allocation8], %s552
          %554 = dma.done %s550, 128
        $region68: #{tpu_custom_call.1} parent=63 // pred_fallthru
          _
        // Predicated region
        $region69: #{tpu_custom_call.1} parent=63 // pred_check
          %p555 = pneg %p206
        $region70: #{tpu_custom_call.1} parent=63 // pred_check_branch
          %557 = sbr.rel (%p555) target = $region72
        $region71: #{tpu_custom_call.1} parent=63 // pred_region
          %s558 = sand.u32 %s191, 1
          %s559 = scalar_lea.sflag [#allocation10], %s558
          %s560 = sand.u32 %s191, 1
          %s561 = smul.addr %s560, 8
          %s562 = scalar_lea.vmem [#allocation9], %s561
          %563 = dma.done %s559, 128
        $region72: #{tpu_custom_call.1} parent=63 // pred_fallthru
          _
      $region64: #{tpu_custom_call.1} parent=5 // pred_fallthru
        _
    $region6: #{tpu_custom_call.1} parent=1 // loop_footer
      %s27 = sadd.s32 1, %s23
    $region7: #{tpu_custom_call.1} parent=1 // loop_footer_branch
      %22 = sbr.rel target = $region3
    $region8: #{tpu_custom_call.1} parent=1 // loop_exit
      _
    %564 = vsyncpa [#allocation3], 1
    %s565 = scalar_lea.sflag [#allocation3], 1
    %566 = vsyncpa %s565, 1
    %567 = vsyncpa [#allocation6], 1
    %568 = vsyncpa [#allocation4], 1
    %s569 = scalar_lea.sflag [#allocation4], 1
    %570 = vsyncpa %s569, 1
    %571 = vsyncpa [#allocation10], 1
    %s572 = scalar_lea.sflag [#allocation10], 1
    %573 = vsyncpa %s572, 1

// kernel: tpu_custom_call.1
$region0: #{tpu_custom_call.1}
  #allocation0 [shape = 'u32[]', space=smem, size = 0x4, offset = 0x4, fixed_abs, tag = 'smem constant byte address 0x4 - core index']
  #allocation1 [shape = 'u32[144,128]{1,0:T(1,128)}', space=vmem, size = 0x12000, scoped, tag = 'internal scratch']
  %s0 = inlined_call_operand.hbm [shape: f32[2,8,64], index: 0, kind: input, shape index: {}]
  %s1 = inlined_call_operand.hbm [shape: f32[64,64], index: 1, kind: input, shape index: {}]
  %s2 = inlined_call_operand.vmem [shape: f32[1,64], index: 2, kind: input, shape index: {}]
  %s3 = inlined_call_operand.hbm [shape: f32[64,64], index: 3, kind: input, shape index: {}]
  %s4 = inlined_call_operand.vmem [shape: f32[1,64], index: 4, kind: input, shape index: {}]
  %s5 = inlined_call_operand.hbm [shape: f32[2,8,64], index: 5, kind: output, shape index: {0}]
  %s6 = inlined_call_operand.hbm [shape: f32[2,8,64], index: 6, kind: output, shape index: {1}]
  %7 = xla_tuple %s5, %s6
  %s8 = sld [smem:[#allocation0]]
  $region73: #{tpu_custom_call.1} parent=0
    _
  %s10 = ssub.s32 1, %s8
  %s11 = scalar_select 0, %s10, %s8
  $region1: #{tpu_custom_call.1} parent=0
    #allocation2 [shape = 'u8[8192]{0}', space=vmem, size = 0x2000, scoped, tag = 'input window, operand 0']
    #allocation3 [shape = 's32[2]{0}', space=sflag, size = 0x8, scoped, tag = 'scoped memory for tpu_custom_call.1']
    #allocation4 [shape = 's32[2]{0}', space=sflag, size = 0x8, scoped, tag = 'scoped memory for tpu_custom_call.1']
    #allocation5 [shape = 'u8[32768]{0}', space=vmem, size = 0x8000, scoped, tag = 'input window, operand 1, single buffered']
    #allocation6 [shape = 's32[1]{0}', space=sflag, size = 0x4, scoped, tag = 'scoped memory for tpu_custom_call.1']
    #allocation7 [shape = 'u8[32768]{0}', space=vmem, size = 0x8000, scoped, tag = 'input window, operand 3, single buffered']
    #allocation8 [shape = 'u8[8192]{0}', space=vmem, size = 0x2000, scoped, tag = 'output window, operand 0']
    #allocation9 [shape = 'u8[8192]{0}', space=vmem, size = 0x2000, scoped, tag = 'output window, operand 1']
    #allocation10 [shape = 's32[2]{0}', space=sflag, size = 0x8, scoped, tag = 'scoped memory for tpu_custom_call.1']
    %12 = vsyncpa [#allocation3], 0
    %s13 = scalar_lea.sflag [#allocation3], 1
    %14 = vsyncpa %s13, 0
    %15 = vsyncpa [#allocation6], 0
    %16 = vsyncpa [#allocation4], 0
    %s17 = scalar_lea.sflag [#allocation4], 1
    %18 = vsyncpa %s17, 0
    %19 = vsyncpa [#allocation10], 0
    %s20 = scalar_lea.sflag [#allocation10], 1
    %21 = vsyncpa %s20, 0
    loop: start=0, step=1, limit=4
    $region2: #{tpu_custom_call.1} parent=1 // loop_pre_header
      _
    $region3: #{tpu_custom_call.1} parent=1 // loop_header
      %s23 = sphi 0, %s27
      %p24 = scmp.ge.s32.totalorder %s23, 4
      %s30 = sphi 0, %s42
      %s31 = sphi 0, %s38
      %s32 = sphi 0, %s30
      %s33 = sphi 0, %s31
      %s34 = sphi 0, %s32
      %s35 = sphi 0, %s33
      %s47 = sphi 0, %s49
      %s50 = sphi 0, %s47
      %s51 = sphi 0, %s50
      %s67 = sphi 0, %s51
      %s71 = sphi 0, %s71
      %s73 = sphi 0, %s71
      %s74 = sphi 0, %s73
      %s88 = sphi 0, %s74
      %s92 = sphi 0, %s92
      %s94 = sphi 0, %s92
      %s95 = sphi 0, %s94
      %s109 = sphi 0, %s95
      %s113 = sphi 0, %s113
      %s115 = sphi 0, %s113
      %s116 = sphi 0, %s115
      %s130 = sphi 0, %s116
      %s134 = sphi 0, %s134
      %s136 = sphi 0, %s134
      %s137 = sphi 0, %s136
      %s151 = sphi 0, %s137
      %s159 = sphi 0, %s161
      %s162 = sphi 0, %s159
      %s163 = sphi 0, %s162
      %s179 = sphi 0, %s163
      %s187 = sphi 0, %s189
      %s190 = sphi 0, %s187
      %s191 = sphi 0, %s190
      %s207 = sphi 0, %s191
    $region4: #{tpu_custom_call.1} parent=1 // loop_header_branch
      %26 = sbr.rel (%p24) target = $region8
    $region5: #{tpu_custom_call.1} parent=1 // loop_body
      %s28 = ssub.s32 %s23, 1
      %s29 = ssub.s32 %s23, 2
      %s36 = sadd.s32 1, %s31
      %p37 = scmp.ge.s32.totalorder %s36, 1
      %s38 = scalar_select %p37, 0, %s36
      %s39 = sadd.s32 1, %s30
      %s40 = scalar_select %p37, %s39, %s30
      %p41 = scmp.ge.s32.totalorder %s40, 2
      %s42 = scalar_select %p41, 0, %s40
      %s43 = ssub.s32 %s30, %s42
      %s44 = ssub.s32 %s31, %s38
      %s45 = sor.u32 %s43, %s44
      %p46 = scmp.eq.s32.totalorder %s45, 0
      %s48 = sadd.s32 %s47, 1
      %s49 = scalar_select %p46, %s47, %s48
      %p52 = pneg %p46
      %p53 = scmp.eq.s32.totalorder %s23, 1
      %p54 = por %p52, %p53
      %p55 = scmp.ne.s32.totalorder %s47, %s50
      %p56 = scmp.eq.s32.totalorder %s23, 0
      %p57 = por %p55, %p56
      %p58 = scmp.ne.s32.totalorder %s47, %s50
      %p59 = scmp.eq.s32.totalorder %s28, 1
      %p60 = por %p58, %p59
      %p61 = scmp.ne.s32.totalorder %s50, %s51
      %p62 = scmp.eq.s32.totalorder %s28, 0
      %p63 = por %p61, %p62
      %p64 = scmp.ne.s32.totalorder %s50, %s51
      %p65 = scmp.eq.s32.totalorder %s29, 1
      %p66 = por %p64, %p65
      %p68 = scmp.ne.s32.totalorder %s51, %s67
      %p69 = scmp.eq.s32.totalorder %s29, 0
      %p70 = por %p68, %p69
      %s72 = sadd.s32 %s71, 1
      %p75 = scmp.eq.s32.totalorder %s23, 1
      %p76 = scmp.ne.s32.totalorder %s71, %s73
      %p77 = scmp.eq.s32.totalorder %s23, 0
      %p78 = por %p76, %p77
      %p79 = scmp.ne.s32.totalorder %s71, %s73
      %p80 = scmp.eq.s32.totalorder %s28, 1
      %p81 = por %p79, %p80
      %p82 = scmp.ne.s32.totalorder %s73, %s74
      %p83 = scmp.eq.s32.totalorder %s28, 0
      %p84 = por %p82, %p83
      %p85 = scmp.ne.s32.totalorder %s73, %s74
      %p86 = scmp.eq.s32.totalorder %s29, 1
      %p87 = por %p85, %p86
      %p89 = scmp.ne.s32.totalorder %s74, %s88
      %p90 = scmp.eq.s32.totalorder %s29, 0
      %p91 = por %p89, %p90
      %s93 = sadd.s32 %s92, 1
      %p96 = scmp.eq.s32.totalorder %s23, 1
      %p97 = scmp.ne.s32.totalorder %s92, %s94
      %p98 = scmp.eq.s32.totalorder %s23, 0
      %p99 = por %p97, %p98
      %p100 = scmp.ne.s32.totalorder %s92, %s94
      %p101 = scmp.eq.s32.totalorder %s28, 1
      %p102 = por %p100, %p101
      %p103 = scmp.ne.s32.totalorder %s94, %s95
      %p104 = scmp.eq.s32.totalorder %s28, 0
      %p105 = por %p103, %p104
      %p106 = scmp.ne.s32.totalorder %s94, %s95
      %p107 = scmp.eq.s32.totalorder %s29, 1
      %p108 = por %p106, %p107
      %p110 = scmp.ne.s32.totalorder %s95, %s109
      %p111 = scmp.eq.s32.totalorder %s29, 0
      %p112 = por %p110, %p111
      %s114 = sadd.s32 %s113, 1
      %p117 = scmp.eq.s32.totalorder %s23, 1
      %p118 = scmp.ne.s32.totalorder %s113, %s115
      %p119 = scmp.eq.s32.totalorder %s23, 0
      %p120 = por %p118, %p119
      %p121 = scmp.ne.s32.totalorder %s113, %s115
      %p122 = scmp.eq.s32.totalorder %s28, 1
      %p123 = por %p121, %p122
      %p124 = scmp.ne.s32.totalorder %s115, %s116
      %p125 = scmp.eq.s32.totalorder %s28, 0
      %p126 = por %p124, %p125
      %p127 = scmp.ne.s32.totalorder %s115, %s116
      %p128 = scmp.eq.s32.totalorder %s29, 1
      %p129 = por %p127, %p128
      %p131 = scmp.ne.s32.totalorder %s116, %s130
      %p132 = scmp.eq.s32.totalorder %s29, 0
      %p133 = por %p131, %p132
      %s135 = sadd.s32 %s134, 1
      %p138 = scmp.eq.s32.totalorder %s23, 1
      %p139 = scmp.ne.s32.totalorder %s134, %s136
      %p140 = scmp.eq.s32.totalorder %s23, 0
      %p141 = por %p139, %p140
      %p142 = scmp.ne.s32.totalorder %s134, %s136
      %p143 = scmp.eq.s32.totalorder %s28, 1
      %p144 = por %p142, %p143
      %p145 = scmp.ne.s32.totalorder %s136, %s137
      %p146 = scmp.eq.s32.totalorder %s28, 0
      %p147 = por %p145, %p146
      %p148 = scmp.ne.s32.totalorder %s136, %s137
      %p149 = scmp.eq.s32.totalorder %s29, 1
      %p150 = por %p148, %p149
      %p152 = scmp.ne.s32.totalorder %s137, %s151
      %p153 = scmp.eq.s32.totalorder %s29, 0
      %p154 = por %p152, %p153
      %s155 = ssub.s32 %s30, %s42
      %s156 = ssub.s32 %s31, %s38
      %s157 = sor.u32 %s155, %s156
      %p158 = scmp.eq.s32.totalorder %s157, 0
      %s160 = sadd.s32 %s159, 1
      %s161 = scalar_select %p158, %s159, %s160
      %p164 = pneg %p158
      %p165 = scmp.eq.s32.totalorder %s23, 1
      %p166 = por %p164, %p165
      %p167 = scmp.ne.s32.totalorder %s159, %s162
      %p168 = scmp.eq.s32.totalorder %s23, 0
      %p169 = por %p167, %p168
      %p170 = scmp.ne.s32.totalorder %s159, %s162
      %p171 = scmp.eq.s32.totalorder %s28, 1
      %p172 = por %p170, %p171
      %p173 = scmp.ne.s32.totalorder %s162, %s163
      %p174 = scmp.eq.s32.totalorder %s28, 0
      %p175 = por %p173, %p174
      %p176 = scmp.ne.s32.totalorder %s162, %s163
      %p177 = scmp.eq.s32.totalorder %s29, 1
      %p178 = por %p176, %p177
      %p180 = scmp.ne.s32.totalorder %s163, %s179
      %p181 = scmp.eq.s32.totalorder %s29, 0
      %p182 = por %p180, %p181
      %s183 = ssub.s32 %s30, %s42
      %s184 = ssub.s32 %s31, %s38
      %s185 = sor.u32 %s183, %s184
      %p186 = scmp.eq.s32.totalorder %s185, 0
      %s188 = sadd.s32 %s187, 1
      %s189 = scalar_select %p186, %s187, %s188
      %p192 = pneg %p186
      %p193 = scmp.eq.s32.totalorder %s23, 1
      %p194 = por %p192, %p193
      %p195 = scmp.ne.s32.totalorder %s187, %s190
      %p196 = scmp.eq.s32.totalorder %s23, 0
      %p197 = por %p195, %p196
      %p198 = scmp.ne.s32.totalorder %s187, %s190
      %p199 = scmp.eq.s32.totalorder %s28, 1
      %p200 = por %p198, %p199
      %p201 = scmp.ne.s32.totalorder %s190, %s191
      %p202 = scmp.eq.s32.totalorder %s28, 0
      %p203 = por %p201, %p202
      %p204 = scmp.ne.s32.totalorder %s190, %s191
      %p205 = scmp.eq.s32.totalorder %s29, 1
      %p206 = por %p204, %p205
      %p208 = scmp.ne.s32.totalorder %s191, %s207
      %p209 = scmp.eq.s32.totalorder %s29, 0
      %p210 = por %p208, %p209
      %p211 = scmp.le.s32.totalorder 1, %s23
      %p212 = scmp.lt.s32.totalorder %s23, 3
      %p213 = pnand %p211, %p212
      %p214 = pneg %p213
      // Predicated region
      $region9: #{tpu_custom_call.1} parent=5 // pred_check
        _
      $region10: #{tpu_custom_call.1} parent=5 // pred_check_branch
        %216 = sbr.rel (%p213) target = $region12
      $region11: #{tpu_custom_call.1} parent=5 // pred_region
        %s217 = ssub.s32 %s23, 1
        // Predicated region
        $region13: #{tpu_custom_call.1} parent=11 // pred_check
          %p218 = pneg %p84
        $region14: #{tpu_custom_call.1} parent=11 // pred_check_branch
          %220 = sbr.rel (%p218) target = $region16
        $region15: #{tpu_custom_call.1} parent=11 // pred_region
          %s222 = ssub.s32 1024, 1024
          %223 = vsyncadd [#allocation6], %s222
          %s224 = sshll.u32 [#allocation5], 4
          %s225 = int_to_ptr.vmem [resolvable:$true] %s224
          %230 = dma.hbm_to_vmem [thread:$0]  %s1, 1024, %s225, [#allocation6], 128, 128, 8
        $region16: #{tpu_custom_call.1} parent=11 // pred_fallthru
          _
        // Predicated region
        $region17: #{tpu_custom_call.1} parent=11 // pred_check
          %p231 = pneg %p105
        $region18: #{tpu_custom_call.1} parent=11 // pred_check_branch
          %233 = sbr.rel (%p231) target = $region20
        $region19: #{tpu_custom_call.1} parent=11 // pred_region
          _
        $region20: #{tpu_custom_call.1} parent=11 // pred_fallthru
          _
        // Predicated region
        $region21: #{tpu_custom_call.1} parent=11 // pred_check
          %p234 = pneg %p126
        $region22: #{tpu_custom_call.1} parent=11 // pred_check_branch
          %236 = sbr.rel (%p234) target = $region24
        $region23: #{tpu_custom_call.1} parent=11 // pred_region
          %s238 = ssub.s32 1024, 1024
          %239 = vsyncadd [#allocation6], %s238
          %s240 = sshll.u32 [#allocation7], 4
          %s241 = int_to_ptr.vmem [resolvable:$true] %s240
          %246 = dma.hbm_to_vmem [thread:$0]  %s3, 1024, %s241, [#allocation6], 128, 128, 8
        $region24: #{tpu_custom_call.1} parent=11 // pred_fallthru
          _
        // Predicated region
        $region25: #{tpu_custom_call.1} parent=11 // pred_check
          %p247 = pneg %p147
        $region26: #{tpu_custom_call.1} parent=11 // pred_check_branch
          %249 = sbr.rel (%p247) target = $region28
        $region27: #{tpu_custom_call.1} parent=11 // pred_region
          _
        $region28: #{tpu_custom_call.1} parent=11 // pred_fallthru
          _
      $region12: #{tpu_custom_call.1} parent=5 // pred_fallthru
        _
      %p250 = scmp.lt.s32.totalorder %s23, 2
      // Predicated region
      $region29: #{tpu_custom_call.1} parent=5 // pred_check
        %p251 = pneg %p250
      $region30: #{tpu_custom_call.1} parent=5 // pred_check_branch
        %253 = sbr.rel (%p251) target = $region32
      $region31: #{tpu_custom_call.1} parent=5 // pred_region
        // Predicated region
        $region33: #{tpu_custom_call.1} parent=31 // pred_check
          %p254 = pneg %p57
        $region34: #{tpu_custom_call.1} parent=31 // pred_check_branch
          %256 = sbr.rel (%p254) target = $region36
        $region35: #{tpu_custom_call.1} parent=31 // pred_region
          %s257 = sand.u32 %s47, 1
          %s258 = scalar_lea.sflag [#allocation3], %s257
          %s259 = sand.u32 %s47, 1
          %s260 = smul.addr %s259, 8
          %s261 = scalar_lea.vmem [#allocation2], %s260
          %s263 = ssub.s32 128, 128
          %264 = vsyncadd %s258, %s263
          %s265 = sadd.s32 %s31, %s30
          %s266 = smul.addr %s265, 128
          %s267 = scalar_lea.hbm %s0, %s266
          %s269 = sshll.u32 %s261, 4
          %s270 = int_to_ptr.vmem [resolvable:$true] %s269
          %272 = dma.hbm_to_vmem [thread:$0]  %s267, 128, %s270, %s258
        $region36: #{tpu_custom_call.1} parent=31 // pred_fallthru
          _
      $region32: #{tpu_custom_call.1} parent=5 // pred_fallthru
        _
      %p273 = scmp.le.s32.totalorder 1, %s23
      %p274 = scmp.lt.s32.totalorder %s23, 3
      %p275 = pnand %p273, %p274
      %p276 = pneg %p275
      // Predicated region
      $region37: #{tpu_custom_call.1} parent=5 // pred_check
        _
      $region38: #{tpu_custom_call.1} parent=5 // pred_check_branch
        %278 = sbr.rel (%p275) target = $region40
      $region39: #{tpu_custom_call.1} parent=5 // pred_region
        %s279 = ssub.s32 %s23, 1
        %s280 = sand.u32 %s50, 1
        %s281 = scalar_lea.sflag [#allocation3], %s280
        %s282 = sand.u32 %s50, 1
        %s283 = smul.addr %s282, 8
        %s284 = scalar_lea.vmem [#allocation2], %s283
        // Predicated region
        $region41: #{tpu_custom_call.1} parent=39 // pred_check
          %p285 = pneg %p63
        $region42: #{tpu_custom_call.1} parent=39 // pred_check_branch
          %287 = sbr.rel (%p285) target = $region44
        $region43: #{tpu_custom_call.1} parent=39 // pred_region
          %288 = dma.done %s281, 128
        $region44: #{tpu_custom_call.1} parent=39 // pred_fallthru
          _
        // Predicated region
        $region45: #{tpu_custom_call.1} parent=39 // pred_check
          %p289 = pneg %p84
        $region46: #{tpu_custom_call.1} parent=39 // pred_check_branch
          %291 = sbr.rel (%p289) target = $region48
        $region47: #{tpu_custom_call.1} parent=39 // pred_region
          %292 = dma.done [#allocation6], 1024
        $region48: #{tpu_custom_call.1} parent=39 // pred_fallthru
          _
        // Predicated region
        $region49: #{tpu_custom_call.1} parent=39 // pred_check
          %p293 = pneg %p126
        $region50: #{tpu_custom_call.1} parent=39 // pred_check_branch
          %295 = sbr.rel (%p293) target = $region52
        $region51: #{tpu_custom_call.1} parent=39 // pred_region
          %296 = dma.done [#allocation6], 1024
        $region52: #{tpu_custom_call.1} parent=39 // pred_fallthru
          _
        %s297 = sand.u32 %s50, 1
        %s298 = scalar_lea.sflag [#allocation3], %s297
        %s299 = sand.u32 %s50, 1
        %s300 = smul.addr %s299, 8
        %s301 = scalar_lea.vmem [#allocation2], %s300
        %p302 = pneg %p63
        %p303 = pneg %p60
        %p304 = pneg %p84
        %p305 = pneg %p81
        %p306 = pneg %p105
        %p307 = pneg %p102
        %p308 = pneg %p126
        %p309 = pneg %p123
        %p310 = pneg %p147
        %p311 = pneg %p144
        %p312 = pneg %p175
        %p313 = pneg %p172
        %s314 = sand.u32 %s162, 1
        %s315 = scalar_lea.sflag [#allocation4], %s314
        %s316 = sand.u32 %s162, 1
        %s317 = smul.addr %s316, 8
        %s318 = scalar_lea.vmem [#allocation8], %s317
        %p319 = pneg %p203
        %p320 = pneg %p200
        %s321 = sand.u32 %s190, 1
        %s322 = scalar_lea.sflag [#allocation10], %s321
        %s323 = sand.u32 %s190, 1
        %s324 = smul.addr %s323, 8
        %s325 = scalar_lea.vmem [#allocation9], %s324
        %v326 = vld [vmem:[%s284] sm:$0xff]
        %v327 = vld [vmem:[#allocation5] sm:$0xff]
        %v328 = vld [vmem:[#allocation5 + $0x8] sm:$0xff]
        %v329 = vld [vmem:[#allocation5 + $0x10] sm:$0xff]
        %v330 = vld [vmem:[#allocation5 + $0x18] sm:$0xff]
        %v331 = vld [vmem:[#allocation5 + $0x20] sm:$0xff]
        %v332 = vld [vmem:[#allocation5 + $0x28] sm:$0xff]
        %v333 = vld [vmem:[#allocation5 + $0x30] sm:$0xff]
        %v334 = vld [vmem:[#allocation5 + $0x38] sm:$0xff]
        %v335 = vld [vmem:[%s2] sm:$0x1]
        %v337 = vlaneseq
        %v338 = vshrl.u32 %v337, 7
        %v339 = vsub.s32 0, %v338
        %v340 = vrot.slane %v335, %v339
        %vm342 = vcmask 523264
        %v344 = vsel %vm342, %v326, 0
        %346 = vmatprep.subr.mxu0 0.0
        %347 = vmatpush1.msra.mxu0 0.0
        %348 = vmatprep.subr.mxu0 0.0
        %349 = vmatpush1.msra.mxu0 0.0
        %350 = vmatprep.subr.mxu0 0.0
        %351 = vmatpush1.msra.mxu0 0.0
        %352 = vmatprep.subr.mxu0 0.0
        %353 = vmatpush1.msra.mxu0 0.0
        %354 = vmatprep.subr.mxu0 0.0
        %355 = vmatpush1.msra.mxu0 0.0
        %356 = vmatprep.subr.mxu0 0.0
        %357 = vmatpush1.msra.mxu0 0.0
        %358 = vmatprep.subr.mxu0 0.0
        %359 = vmatpush1.msra.mxu0 0.0
        %360 = vmatprep.subr.mxu0 0.0
        %361 = vmatpush1.msra.mxu0 0.0
        %362 = vmatprep.subr.mxu0 0.0
        %363 = vmatpush1.msra.mxu0 %v334
        %364 = vmatprep.subr.mxu0 0.0
        %365 = vmatpush1.msra.mxu0 %v333
        %366 = vmatprep.subr.mxu0 0.0
        %367 = vmatpush1.msra.mxu0 %v332
        %368 = vmatprep.subr.mxu0 0.0
        %369 = vmatpush1.msra.mxu0 %v331
        %370 = vmatprep.subr.mxu0 0.0
        %371 = vmatpush1.msra.mxu0 %v330
        %372 = vmatprep.subr.mxu0 0.0
        %373 = vmatpush1.msra.mxu0 %v329
        %374 = vmatprep.subr.mxu0 0.0
        %375 = vmatpush1.msra.mxu0 %v328
        %376 = vmatprep.subr.mxu0 0.0
        %377 = vmatpush1.msra.mxu0 %v327
        %378 = vmatprep.subr.mxu0 0.0
        %379 = vmatpush2.msra.mxu0 0.0
        %380 = vmatprep.subr.mxu0 0.0
        %381 = vmatpush2.msra.mxu0 0.0
        %382 = vmatprep.subr.mxu0 0.0
        %383 = vmatpush2.msra.mxu0 0.0
        %384 = vmatprep.subr.mxu0 0.0
        %385 = vmatpush2.msra.mxu0 0.0
        %386 = vmatprep.subr.mxu0 0.0
        %387 = vmatpush2.msra.mxu0 0.0
        %388 = vmatprep.subr.mxu0 0.0
        %389 = vmatpush2.msra.mxu0 0.0
        %390 = vmatprep.subr.mxu0 0.0
        %391 = vmatpush2.msra.mxu0 0.0
        %392 = vmatprep.subr.mxu0 0.0
        %393 = vmatpush2.msra.mxu0 0.0
        %394 = vmatprep.subr.mxu0 0.0
        %395 = vmatpush2.msra.mxu0 0.0
        %396 = vmatprep.subr.mxu0 0.0
        %397 = vmatpush2.msra.mxu0 0.0
        %398 = vmatprep.subr.mxu0 0.0
        %399 = vmatpush2.msra.mxu0 0.0
        %400 = vmatprep.subr.mxu0 0.0
        %401 = vmatpush2.msra.mxu0 0.0
        %402 = vmatprep.subr.mxu0 0.0
        %403 = vmatpush2.msra.mxu0 0.0
        %404 = vmatprep.subr.mxu0 0.0
        %405 = vmatpush2.msra.mxu0 0.0
        %406 = vmatprep.subr.mxu0 0.0
        %407 = vmatpush2.msra.mxu0 0.0
        %408 = vmatprep.subr.mxu0 0.0
        %409 = vmatpush2.msra.mxu0 0.0
        %410 = vmatprep.mubr.f32.mxu0 0.0
        %411 = vmatmul.mubr.f32.gmra.mxu0 %v344
        %v412 = vpop.f32.mrf.mxu0
        %v413 = vadd.f32 %v340, %v412
        %v414 = vpop.f32.mrf.mxu0
        %415 = vdwg.mxu0
        %v416 = vld [vmem:[#allocation7] sm:$0xff]
        %v417 = vld [vmem:[#allocation7 + $0x8] sm:$0xff]
        %v418 = vld [vmem:[#allocation7 + $0x10] sm:$0xff]
        %v419 = vld [vmem:[#allocation7 + $0x18] sm:$0xff]
        %v420 = vld [vmem:[#allocation7 + $0x20] sm:$0xff]
        %v421 = vld [vmem:[#allocation7 + $0x28] sm:$0xff]
        %v422 = vld [vmem:[#allocation7 + $0x30] sm:$0xff]
        %v423 = vld [vmem:[#allocation7 + $0x38] sm:$0xff]
        %v424 = vld [vmem:[%s4] sm:$0x1]
        %v426 = vlaneseq
        %v427 = vshrl.u32 %v426, 7
        %v428 = vsub.s32 0, %v427
        %v429 = vrot.slane %v424, %v428
        %431 = vmatprep.subr.mxu0 0.0
        %432 = vmatpush1.msra.mxu0 0.0
        %433 = vmatprep.subr.mxu0 0.0
        %434 = vmatpush1.msra.mxu0 0.0
        %435 = vmatprep.subr.mxu0 0.0
        %436 = vmatpush1.msra.mxu0 0.0
        %437 = vmatprep.subr.mxu0 0.0
        %438 = vmatpush1.msra.mxu0 0.0
        %439 = vmatprep.subr.mxu0 0.0
        %440 = vmatpush1.msra.mxu0 0.0
        %441 = vmatprep.subr.mxu0 0.0
        %442 = vmatpush1.msra.mxu0 0.0
        %443 = vmatprep.subr.mxu0 0.0
        %444 = vmatpush1.msra.mxu0 0.0
        %445 = vmatprep.subr.mxu0 0.0
        %446 = vmatpush1.msra.mxu0 0.0
        %447 = vmatprep.subr.mxu0 0.0
        %448 = vmatpush1.msra.mxu0 %v423
        %449 = vmatprep.subr.mxu0 0.0
        %450 = vmatpush1.msra.mxu0 %v422
        %451 = vmatprep.subr.mxu0 0.0
        %452 = vmatpush1.msra.mxu0 %v421
        %453 = vmatprep.subr.mxu0 0.0
        %454 = vmatpush1.msra.mxu0 %v420
        %455 = vmatprep.subr.mxu0 0.0
        %456 = vmatpush1.msra.mxu0 %v419
        %457 = vmatprep.subr.mxu0 0.0
        %458 = vmatpush1.msra.mxu0 %v418
        %459 = vmatprep.subr.mxu0 0.0
        %460 = vmatpush1.msra.mxu0 %v417
        %461 = vmatprep.subr.mxu0 0.0
        %462 = vmatpush1.msra.mxu0 %v416
        %463 = vmatprep.subr.mxu0 0.0
        %464 = vmatpush2.msra.mxu0 0.0
        %465 = vmatprep.subr.mxu0 0.0
        %466 = vmatpush2.msra.mxu0 0.0
        %467 = vmatprep.subr.mxu0 0.0
        %468 = vmatpush2.msra.mxu0 0.0
        %469 = vmatprep.subr.mxu0 0.0
        %470 = vmatpush2.msra.mxu0 0.0
        %471 = vmatprep.subr.mxu0 0.0
        %472 = vmatpush2.msra.mxu0 0.0
        %473 = vmatprep.subr.mxu0 0.0
        %474 = vmatpush2.msra.mxu0 0.0
        %475 = vmatprep.subr.mxu0 0.0
        %476 = vmatpush2.msra.mxu0 0.0
        %477 = vmatprep.subr.mxu0 0.0
        %478 = vmatpush2.msra.mxu0 0.0
        %479 = vmatprep.subr.mxu0 0.0
        %480 = vmatpush2.msra.mxu0 0.0
        %481 = vmatprep.subr.mxu0 0.0
        %482 = vmatpush2.msra.mxu0 0.0
        %483 = vmatprep.subr.mxu0 0.0
        %484 = vmatpush2.msra.mxu0 0.0
        %485 = vmatprep.subr.mxu0 0.0
        %486 = vmatpush2.msra.mxu0 0.0
        %487 = vmatprep.subr.mxu0 0.0
        %488 = vmatpush2.msra.mxu0 0.0
        %489 = vmatprep.subr.mxu0 0.0
        %490 = vmatpush2.msra.mxu0 0.0
        %491 = vmatprep.subr.mxu0 0.0
        %492 = vmatpush2.msra.mxu0 0.0
        %493 = vmatprep.subr.mxu0 0.0
        %494 = vmatpush2.msra.mxu0 0.0
        %495 = vmatprep.mubr.f32.mxu0 0.0
        %496 = vmatmul.mubr.f32.gmra.mxu0 %v344
        %v497 = vpop.f32.mrf.mxu0
        %v498 = vadd.f32 %v429, %v497
        %v499 = vpop.f32.mrf.mxu0
        %500 = vdwg.mxu0
        %501 = vst.msk [vmem:[%s318] sm:$0xff] %vm342, %v413
        %502 = vst.msk [vmem:[%s325] sm:$0xff] %vm342, %v498
        %s503 = sand.u32 %s162, 1
        %s504 = scalar_lea.sflag [#allocation4], %s503
        %s505 = sand.u32 %s162, 1
        %s506 = smul.addr %s505, 8
        %s507 = scalar_lea.vmem [#allocation8], %s506
        %s508 = sand.u32 %s190, 1
        %s509 = scalar_lea.sflag [#allocation10], %s508
        %s510 = sand.u32 %s190, 1
        %s511 = smul.addr %s510, 8
        %s512 = scalar_lea.vmem [#allocation9], %s511
        // Predicated region
        $region53: #{tpu_custom_call.1} parent=39 // pred_check
          %p513 = pneg %p172
        $region54: #{tpu_custom_call.1} parent=39 // pred_check_branch
          %515 = sbr.rel (%p513) target = $region56
        $region55: #{tpu_custom_call.1} parent=39 // pred_region
          %s517 = ssub.s32 128, 128
          %518 = vsyncadd %s504, %s517
          %s519 = sadd.s32 %s33, %s32
          %s520 = smul.addr %s519, 128
          %s521 = scalar_lea.hbm %s5, %s520
          %s523 = sshll.u32 %s507, 4
          %s524 = int_to_ptr.vmem [resolvable:$true] %s523
          %526 = dma.vmem_to_hbm [thread:$0]  %s524, 128, %s521, %s504
        $region56: #{tpu_custom_call.1} parent=39 // pred_fallthru
          _
        // Predicated region
        $region57: #{tpu_custom_call.1} parent=39 // pred_check
          %p527 = pneg %p200
        $region58: #{tpu_custom_call.1} parent=39 // pred_check_branch
          %529 = sbr.rel (%p527) target = $region60
        $region59: #{tpu_custom_call.1} parent=39 // pred_region
          %s531 = ssub.s32 128, 128
          %532 = vsyncadd %s509, %s531
          %s533 = sadd.s32 %s33, %s32
          %s534 = smul.addr %s533, 128
          %s535 = scalar_lea.hbm %s6, %s534
          %s537 = sshll.u32 %s512, 4
          %s538 = int_to_ptr.vmem [resolvable:$true] %s537
          %540 = dma.vmem_to_hbm [thread:$0]  %s538, 128, %s535, %s509
        $region60: #{tpu_custom_call.1} parent=39 // pred_fallthru
          _
      $region40: #{tpu_custom_call.1} parent=5 // pred_fallthru
        _
      %p541 = scmp.le.s32.totalorder 2, %s23
      // Predicated region
      $region61: #{tpu_custom_call.1} parent=5 // pred_check
        %p542 = pneg %p541
      $region62: #{tpu_custom_call.1} parent=5 // pred_check_branch
        %544 = sbr.rel (%p542) target = $region64
      $region63: #{tpu_custom_call.1} parent=5 // pred_region
        %s545 = ssub.s32 %s23, 2
        // Predicated region
        $region65: #{tpu_custom_call.1} parent=63 // pred_check
          %p546 = pneg %p178
        $region66: #{tpu_custom_call.1} parent=63 // pred_check_branch
          %548 = sbr.rel (%p546) target = $region68
        $region67: #{tpu_custom_call.1} parent=63 // pred_region
          %s549 = sand.u32 %s163, 1
          %s550 = scalar_lea.sflag [#allocation4], %s549
          %s551 = sand.u32 %s163, 1
          %s552 = smul.addr %s551, 8
          %s553 = scalar_lea.vmem [#allocation8], %s552
          %554 = dma.done %s550, 128
        $region68: #{tpu_custom_call.1} parent=63 // pred_fallthru
          _
        // Predicated region
        $region69: #{tpu_custom_call.1} parent=63 // pred_check
          %p555 = pneg %p206
        $region70: #{tpu_custom_call.1} parent=63 // pred_check_branch
          %557 = sbr.rel (%p555) target = $region72
        $region71: #{tpu_custom_call.1} parent=63 // pred_region
          %s558 = sand.u32 %s191, 1
          %s559 = scalar_lea.sflag [#allocation10], %s558
          %s560 = sand.u32 %s191, 1
          %s561 = smul.addr %s560, 8
          %s562 = scalar_lea.vmem [#allocation9], %s561
          %563 = dma.done %s559, 128
        $region72: #{tpu_custom_call.1} parent=63 // pred_fallthru
          _
      $region64: #{tpu_custom_call.1} parent=5 // pred_fallthru
        _
    $region6: #{tpu_custom_call.1} parent=1 // loop_footer
      %s27 = sadd.s32 1, %s23
    $region7: #{tpu_custom_call.1} parent=1 // loop_footer_branch
      %22 = sbr.rel target = $region3
    $region8: #{tpu_custom_call.1} parent=1 // loop_exit
      _
    %564 = vsyncpa [#allocation3], 1
    %s565 = scalar_lea.sflag [#allocation3], 1
    %566 = vsyncpa %s565, 1
    %567 = vsyncpa [#allocation6], 1
    %568 = vsyncpa [#allocation4], 1
    %s569 = scalar_lea.sflag [#allocation4], 1
    %570 = vsyncpa %s569, 1
    %571 = vsyncpa [#allocation10], 1
    %s572 = scalar_lea.sflag [#allocation10], 1
    %573 = vsyncpa %s572, 1

</llo_original>
